<compile_context>
chip_gen: v7x
topology: tpu7x:2x2x1
jax: 0.10.0
libtpu: 0.0.40
codegen_flags: <defaults>
</compile_context>

<pallas_src>
import jax
import jax.numpy as jnp
from jax import lax
from jax.experimental import pallas as pl
from jax.experimental.pallas import tpu as pltpu

BN_EPS = 1e-3
# 3x3 taps in (ky*3 + kx) order, expressed as (dy, dx) offsets.
_TAPS = tuple((dy, dx) for dy in (-1, 0, 1) for dx in (-1, 0, 1))


def _round_up(v, m):
    return (v + m - 1) // m * m


# ----------------------------------------------------------------------------
# Fused Inception kernel: one image per grid step, everything resident in VMEM
# ----------------------------------------------------------------------------
def _make_inception_kernel(H, W, ch1x1):
    HW = H * W

    def kernel(x_ref, wa_ref, sa_ref, ba_ref, wb_ref, sb_ref, bb_ref,
               w4_ref, s4_ref, b4_ref, o_ref, col_ref):
        x = x_ref[0]                                       # (Cin, HW) f32

        # Lane coordinate helpers for halo masking (spatial lives in lanes).
        lane = lax.broadcasted_iota(jnp.int32, (1, HW), 1)
        if W & (W - 1) == 0:
            xx = lane & (W - 1)                            # x = lane % W (W pow2)
        else:
            xx = lane % W

        def shifted(v, dy, dx):
            """out[:, y*W+x] = v[:, (y+dy)*W+(x+dx)] plus an in-image mask."""
            d = dy * W + dx
            sv = v if d == 0 else pltpu.roll(v, shift=(-d) % HW, axis=1)
            ly = lane + dy * W                     # == (y+dy)*W + x
            ok = ((ly >= 0) & (ly < HW) &          # 0 <= y+dy < H
                  (xx + dx >= 0) & (xx + dx < W))  # 0 <= x+dx < W
            return ok, sv

        # ---- stage A: branch1 1x1 + branch2/3 reduce 1x1 as one matmul -----
        ya = jnp.dot(wa_ref[...], x, preferred_element_type=jnp.float32)
        ya = jnp.maximum(ya * sa_ref[...] + ba_ref[...], 0.0)
        y1 = ya[:ch1x1]                    # branch1 output            (ch1x1, HW)
        r = ya[ch1x1:]                     # padded reduced activations (cr, HW)
        cr = r.shape[0]

        # ---- stage B: both 3x3 convs as ONE im2col matmul (K = 9*cr) -------
        for t, (dy, dx) in enumerate(_TAPS):
            ok, sv = shifted(r, dy, dx)
            col_ref[t * cr:(t + 1) * cr, :] = jnp.where(ok, sv, 0.0)
        yb = jnp.dot(wb_ref[...], col_ref[...],
                     preferred_element_type=jnp.float32)
        yb = jnp.maximum(yb * sb_ref[...] + bb_ref[...], 0.0)  # (ch3x3+ch5x5, HW)

        # ---- branch4: 3x3 max-pool (stride 1, pad 1) then 1x1 conv ---------
        pooled = x                                     # center tap (always valid)
        for dy, dx in _TAPS:
            if dy == 0 and dx == 0:
                continue
            ok, sv = shifted(x, dy, dx)
            pooled = jnp.maximum(pooled, jnp.where(ok, sv, -jnp.inf))
        y4 = jnp.dot(w4_ref[...], pooled, preferred_element_type=jnp.float32)
        y4 = jnp.maximum(y4 * s4_ref[...] + b4_ref[...], 0.0)

        # ---- concatenated (branch1|branch2|branch3|branch4) channel output -
        o_ref[0] = jnp.concatenate([y1, yb, y4], axis=0).astype(o_ref.dtype)

    return kernel


# ----------------------------------------------------------------------------
# Parameter folding / packing (pure JAX, outside the kernel)
# ----------------------------------------------------------------------------
def fold_bn(p):
    scale = p["gamma"] / jnp.sqrt(p["var"] + BN_EPS)
    bias = p["beta"] - p["mean"] * scale
    return scale, bias


def _pack_params(params, cin):
    """Fold BN and pack the six BasicConv2d weights into 3 fused matmul operands."""
    ch1x1 = params["b1"]["w"].shape[0]
    ch3x3red = params["b2a"]["w"].shape[0]
    ch3x3 = params["b2b"]["w"].shape[0]
    ch5x5red = params["b3a"]["w"].shape[0]
    ch5x5 = params["b3b"]["w"].shape[0]
    pool_proj = params["b4"]["w"].shape[0]

    cred = ch3x3red + ch5x5red
    cred_pad = _round_up(cred, 8)          # sublane-align the im2col row blocks
    npad = cred_pad - cred

    s1, c1 = fold_bn(params["b1"])
    s2a, c2a = fold_bn(params["b2a"])
    s2b, c2b = fold_bn(params["b2b"])
    s3a, c3a = fold_bn(params["b3a"])
    s3b, c3b = fold_bn(params["b3b"])
    s4, c4 = fold_bn(params["b4"])

    zc = jnp.zeros((npad,), jnp.float32)
    # Stage A weight rows: [branch1 | branch2-reduce | branch3-reduce | zero pad]
    wa = jnp.concatenate([params["b1"]["w"][:, :, 0, 0],
                          params["b2a"]["w"][:, :, 0, 0],
                          params["b3a"]["w"][:, :, 0, 0],
                          jnp.zeros((npad, cin), jnp.float32)], axis=0)
    sa = jnp.concatenate([s1, s2a, s3a, zc])[:, None]
    ba = jnp.concatenate([c1, c2a, c3a, zc])[:, None]

    # Stage B: block-structured (ch3x3+ch5x5, 9*cred_pad) im2col weight.
    cb = ch3x3 + ch5x5
    wb3 = jnp.zeros((cb, 9, cred_pad), jnp.float32)
    wb3 = wb3.at[:ch3x3, :, :ch3x3red].set(
        jnp.transpose(params["b2b"]["w"], (0, 2, 3, 1)).reshape(ch3x3, 9, ch3x3red))
    wb3 = wb3.at[ch3x3:, :, ch3x3red:cred].set(
        jnp.transpose(params["b3b"]["w"], (0, 2, 3, 1)).reshape(ch5x5, 9, ch5x5red))
    wb = wb3.reshape(cb, 9 * cred_pad)
    sb = jnp.concatenate([s2b, s3b])[:, None]
    bb = jnp.concatenate([c2b, c3b])[:, None]

    w4 = params["b4"]["w"][:, :, 0, 0]
    dims = dict(ch1x1=ch1x1, ch3x3=ch3x3, ch5x5=ch5x5, pool_proj=pool_proj,
                cred_pad=cred_pad)
    return (wa, sa, ba, wb, sb, bb, w4, s4[:, None], c4[:, None]), dims


# ----------------------------------------------------------------------------
# Public forward (NCHW in, NCHW out) — single pallas_call
# ----------------------------------------------------------------------------
def inception_forward(x_nchw, params):
    N, Cin, H, W = x_nchw.shape
    HW = H * W
    (wa, sa, ba, wb, sb, bb, w4, s4, b4), d = _pack_params(params, Cin)
    ca, cb, kb, pp = wa.shape[0], wb.shape[0], wb.shape[1], w4.shape[0]
    cout = d["ch1x1"] + d["ch3x3"] + d["ch5x5"] + d["pool_proj"]

    kernel = _make_inception_kernel(H, W, d["ch1x1"])

    out = pl.pallas_call(
        kernel,
        out_shape=jax.ShapeDtypeStruct((N, cout, HW), jnp.float32),
        grid=(N,),
        in_specs=[
            pl.BlockSpec((1, Cin, HW), lambda n: (n, 0, 0)),   # x (one image)
            pl.BlockSpec((ca, Cin), lambda n: (0, 0)),          # stage-A weight
            pl.BlockSpec((ca, 1), lambda n: (0, 0)),            # stage-A scale
            pl.BlockSpec((ca, 1), lambda n: (0, 0)),            # stage-A bias
            pl.BlockSpec((cb, kb), lambda n: (0, 0)),            # im2col 3x3 weight
            pl.BlockSpec((cb, 1), lambda n: (0, 0)),
            pl.BlockSpec((cb, 1), lambda n: (0, 0)),
            pl.BlockSpec((pp, Cin), lambda n: (0, 0)),           # branch4 1x1 weight
            pl.BlockSpec((pp, 1), lambda n: (0, 0)),
            pl.BlockSpec((pp, 1), lambda n: (0, 0)),
        ],
        out_specs=pl.BlockSpec((1, cout, HW), lambda n: (n, 0, 0)),
        scratch_shapes=[pltpu.VMEM((9 * d["cred_pad"], HW), jnp.float32)],
        compiler_params=pltpu.CompilerParams(
            dimension_semantics=("parallel",)),
    )(x_nchw.reshape(N, Cin, HW), wa, sa, ba, wb, sb, bb, w4, s4, b4)

    return out.reshape(N, cout, H, W)


# ----------------------------------------------------------------------------
# Deterministic synthetic parameters + pure-JAX reference (correctness only)
# ----------------------------------------------------------------------------
def init_basic_conv(key, cin, cout, ksize):
    kw, kg, kb, km, kv = jax.random.split(key, 5)
    fan_in = cin * ksize * ksize
    w = jax.random.normal(kw, (cout, cin, ksize, ksize), jnp.float32) / jnp.sqrt(fan_in)
    return dict(
        w=w,                                                             # OIHW
        gamma=1.0 + 0.1 * jax.random.normal(kg, (cout,), jnp.float32),
        beta=0.1 * jax.random.normal(kb, (cout,), jnp.float32),
        mean=0.1 * jax.random.normal(km, (cout,), jnp.float32),
        var=jnp.abs(1.0 + 0.1 * jax.random.normal(kv, (cout,), jnp.float32)),
    )


def _ref_basic_conv(x, p, padding):
    y = lax.conv_general_dilated(x, p["w"], (1, 1), [(padding, padding)] * 2,
                                 dimension_numbers=("NCHW", "OIHW", "NCHW"))
    s, b = fold_bn(p)
    return jnp.maximum(y * s[None, :, None, None] + b[None, :, None, None], 0.0)


def _ref_inception(x, params):
    b1 = _ref_basic_conv(x, params["b1"], 0)
    b2 = _ref_basic_conv(_ref_basic_conv(x, params["b2a"], 0), params["b2b"], 1)
    b3 = _ref_basic_conv(_ref_basic_conv(x, params["b3a"], 0), params["b3b"], 1)
    pooled = lax.reduce_window(x, -jnp.inf, lax.max, (1, 1, 3, 3), (1, 1, 1, 1),
                               [(0, 0), (0, 0), (1, 1), (1, 1)])
    b4 = _ref_basic_conv(pooled, params["b4"], 0)
    return jnp.concatenate([b1, b2, b3, b4], axis=1)


if __name__ == "__main__":
    # Inception(in_channels=8, ch1x1=8, ch3x3red=8, ch3x3=16,
    #           ch5x5red=4, ch5x5=8, pool_proj=8)
    in_ch, ch1x1, ch3x3red, ch3x3, ch5x5red, ch5x5, pool_proj = 8, 8, 8, 16, 4, 8, 8
    N, H, W = 2, 16, 16

    ks = jax.random.split(jax.random.PRNGKey(0), 7)
    params = dict(
        b1=init_basic_conv(ks[0], in_ch, ch1x1, 1),
        b2a=init_basic_conv(ks[1], in_ch, ch3x3red, 1),
        b2b=init_basic_conv(ks[2], ch3x3red, ch3x3, 3),
        b3a=init_basic_conv(ks[3], in_ch, ch5x5red, 1),
        b3b=init_basic_conv(ks[4], ch5x5red, ch5x5, 3),
        b4=init_basic_conv(ks[5], in_ch, pool_proj, 1),
    )
    x = jax.random.normal(ks[6], (N, in_ch, H, W), jnp.float32)

    out = jax.block_until_ready(jax.jit(inception_forward)(x, params))
    ref = _ref_inception(x, params)

    assert out.shape == (N, ch1x1 + ch3x3 + ch5x5 + pool_proj, H, W), out.shape
    err = float(jnp.max(jnp.abs(out - ref)))
    assert err < 1e-3, f"mismatch vs reference: {err}"
    print("KERNEL_OK")
</pallas_src>

<mosaic_0001>
module attributes {stable_mosaic.version = 11 : i64} {
  func.func @kernel(%arg0: i32, %arg1: memref<1x8x256xf32, #tpu.memory_space<vmem>>, %arg2: memref<24x8xf32, #tpu.memory_space<vmem>>, %arg3: memref<24x1xf32, #tpu.memory_space<vmem>>, %arg4: memref<24x1xf32, #tpu.memory_space<vmem>>, %arg5: memref<24x144xf32, #tpu.memory_space<vmem>>, %arg6: memref<24x1xf32, #tpu.memory_space<vmem>>, %arg7: memref<24x1xf32, #tpu.memory_space<vmem>>, %arg8: memref<8x8xf32, #tpu.memory_space<vmem>>, %arg9: memref<8x1xf32, #tpu.memory_space<vmem>>, %arg10: memref<8x1xf32, #tpu.memory_space<vmem>>, %arg11: memref<1x40x256xf32, #tpu.memory_space<vmem>>, %arg12: memref<144x256xf32, #tpu.memory_space<vmem>>) attributes {dimension_semantics = [#tpu.dimension_semantics<parallel>], iteration_bounds = array<i64: 2>, scalar_prefetch = 0 : i64, scratch_operands = 1 : i64, tpu.core_type = #tpu.core_type<tc>, window_params = [{transform_indices = @transform_0, window_bounds = array<i64: 1, 8, 256>}, {pipeline_mode = #tpu.pipeline_mode<synchronous>, transform_indices = @transform_1, window_bounds = array<i64: 24, 8>}, {pipeline_mode = #tpu.pipeline_mode<synchronous>, transform_indices = @transform_2, window_bounds = array<i64: 24, 1>}, {pipeline_mode = #tpu.pipeline_mode<synchronous>, transform_indices = @transform_3, window_bounds = array<i64: 24, 1>}, {pipeline_mode = #tpu.pipeline_mode<synchronous>, transform_indices = @transform_4, window_bounds = array<i64: 24, 144>}, {pipeline_mode = #tpu.pipeline_mode<synchronous>, transform_indices = @transform_5, window_bounds = array<i64: 24, 1>}, {pipeline_mode = #tpu.pipeline_mode<synchronous>, transform_indices = @transform_6, window_bounds = array<i64: 24, 1>}, {pipeline_mode = #tpu.pipeline_mode<synchronous>, transform_indices = @transform_7, window_bounds = array<i64: 8, 8>}, {pipeline_mode = #tpu.pipeline_mode<synchronous>, transform_indices = @transform_8, window_bounds = array<i64: 8, 1>}, {pipeline_mode = #tpu.pipeline_mode<synchronous>, transform_indices = @transform_9, window_bounds = array<i64: 8, 1>}, {transform_indices = @transform_10, window_bounds = array<i64: 1, 40, 256>}]} {
    %c0 = arith.constant 0 : index
    %c0_0 = arith.constant 0 : index
    %c0_1 = arith.constant 0 : index
    %0 = vector.load %arg1[%c0, %c0_0, %c0_1] : memref<1x8x256xf32, #tpu.memory_space<vmem>>, vector<1x8x256xf32>
    %1 = vector.shape_cast %0 : vector<1x8x256xf32> to vector<8x256xf32>
    %2 = tpu.iota {dimensions = array<i32: 1>} : vector<1x256xi32>
    %c15_i32 = arith.constant 15 : i32
    %3 = vector.broadcast %c15_i32 : i32 to vector<1x256xi32>
    %4 = arith.andi %2, %3 : vector<1x256xi32>
    %c0_2 = arith.constant 0 : index
    %c0_3 = arith.constant 0 : index
    %5 = vector.load %arg2[%c0_2, %c0_3] : memref<24x8xf32, #tpu.memory_space<vmem>>, vector<24x8xf32>
    %cst = arith.constant dense<0.000000e+00> : vector<24x256xf32>
    %6 = tpu.matmul %5, %1, %cst {dimension_numbers = #tpu.dot_dimension_numbers<[1], [0], [0], [1], [0, 0, 1, 1], [], []>} : vector<24x8xf32>, vector<8x256xf32>, vector<24x256xf32> -> vector<24x256xf32>
    %c0_4 = arith.constant 0 : index
    %c0_5 = arith.constant 0 : index
    %7 = vector.load %arg3[%c0_4, %c0_5] : memref<24x1xf32, #tpu.memory_space<vmem>>, vector<24x1xf32>
    %8 = vector.broadcast %7 : vector<24x1xf32> to vector<24x256xf32>
    %9 = arith.mulf %6, %8 : vector<24x256xf32>
    %c0_6 = arith.constant 0 : index
    %c0_7 = arith.constant 0 : index
    %10 = vector.load %arg4[%c0_6, %c0_7] : memref<24x1xf32, #tpu.memory_space<vmem>>, vector<24x1xf32>
    %11 = vector.broadcast %10 : vector<24x1xf32> to vector<24x256xf32>
    %12 = arith.addf %9, %11 : vector<24x256xf32>
    %cst_8 = arith.constant 0.000000e+00 : f32
    %13 = vector.broadcast %cst_8 : f32 to vector<24x256xf32>
    %14 = arith.maximumf %12, %13 : vector<24x256xf32>
    %15 = vector.extract_strided_slice %14 {offsets = [0, 0], sizes = [8, 256], strides = [1, 1]} : vector<24x256xf32> to vector<8x256xf32>
    %16 = vector.extract_strided_slice %14 {offsets = [8, 0], sizes = [16, 256], strides = [1, 1]} : vector<24x256xf32> to vector<16x256xf32>
    %c17_i32 = arith.constant 17 : i32
    %17 = tpu.dynamic_rotate %16 by %c17_i32 dim 1 : vector<16x256xf32>, i32 -> vector<16x256xf32>
    %c-16_i32 = arith.constant -16 : i32
    %18 = vector.broadcast %c-16_i32 : i32 to vector<1x256xi32>
    %19 = arith.addi %2, %18 : vector<1x256xi32>
    %c0_i32 = arith.constant 0 : i32
    %20 = vector.broadcast %c0_i32 : i32 to vector<1x256xi32>
    %21 = arith.cmpi sge, %19, %20 : vector<1x256xi32>
    %c256_i32 = arith.constant 256 : i32
    %22 = vector.broadcast %c256_i32 : i32 to vector<1x256xi32>
    %23 = arith.cmpi slt, %19, %22 : vector<1x256xi32>
    %24 = arith.andi %21, %23 : vector<1x256xi1>
    %c-1_i32 = arith.constant -1 : i32
    %25 = vector.broadcast %c-1_i32 : i32 to vector<1x256xi32>
    %26 = arith.addi %4, %25 : vector<1x256xi32>
    %c0_i32_9 = arith.constant 0 : i32
    %27 = vector.broadcast %c0_i32_9 : i32 to vector<1x256xi32>
    %28 = arith.cmpi sge, %26, %27 : vector<1x256xi32>
    %29 = arith.andi %24, %28 : vector<1x256xi1>
    %c-1_i32_10 = arith.constant -1 : i32
    %30 = vector.broadcast %c-1_i32_10 : i32 to vector<1x256xi32>
    %31 = arith.addi %4, %30 : vector<1x256xi32>
    %c16_i32 = arith.constant 16 : i32
    %32 = vector.broadcast %c16_i32 : i32 to vector<1x256xi32>
    %33 = arith.cmpi slt, %31, %32 : vector<1x256xi32>
    %34 = arith.andi %29, %33 : vector<1x256xi1>
    %cst_11 = arith.constant 0.000000e+00 : f32
    %35 = vector.shape_cast %34 : vector<1x256xi1> to vector<1x256xi1>
    %36 = vector.broadcast %35 : vector<1x256xi1> to vector<16x256xi1>
    %37 = vector.broadcast %cst_11 : f32 to vector<16x256xf32>
    %38 = arith.select %36, %17, %37 : vector<16x256xi1>, vector<16x256xf32>
    %c0_12 = arith.constant 0 : index
    %c0_13 = arith.constant 0 : index
    %39 = vector.load %arg12[%c0_12, %c0_13] : memref<144x256xf32, #tpu.memory_space<vmem>>, vector<16x256xf32>
    tpu.vector_store %arg12[%c0_12, %c0_13], %38 {strides = array<i32>} : memref<144x256xf32, #tpu.memory_space<vmem>>, vector<16x256xf32>,
    %c16_i32_14 = arith.constant 16 : i32
    %40 = tpu.dynamic_rotate %16 by %c16_i32_14 dim 1 : vector<16x256xf32>, i32 -> vector<16x256xf32>
    %c-16_i32_15 = arith.constant -16 : i32
    %41 = vector.broadcast %c-16_i32_15 : i32 to vector<1x256xi32>
    %42 = arith.addi %2, %41 : vector<1x256xi32>
    %c0_i32_16 = arith.constant 0 : i32
    %43 = vector.broadcast %c0_i32_16 : i32 to vector<1x256xi32>
    %44 = arith.cmpi sge, %42, %43 : vector<1x256xi32>
    %c256_i32_17 = arith.constant 256 : i32
    %45 = vector.broadcast %c256_i32_17 : i32 to vector<1x256xi32>
    %46 = arith.cmpi slt, %42, %45 : vector<1x256xi32>
    %47 = arith.andi %44, %46 : vector<1x256xi1>
    %c0_i32_18 = arith.constant 0 : i32
    %48 = vector.broadcast %c0_i32_18 : i32 to vector<1x256xi32>
    %49 = arith.addi %4, %48 : vector<1x256xi32>
    %c0_i32_19 = arith.constant 0 : i32
    %50 = vector.broadcast %c0_i32_19 : i32 to vector<1x256xi32>
    %51 = arith.cmpi sge, %49, %50 : vector<1x256xi32>
    %52 = arith.andi %47, %51 : vector<1x256xi1>
    %c0_i32_20 = arith.constant 0 : i32
    %53 = vector.broadcast %c0_i32_20 : i32 to vector<1x256xi32>
    %54 = arith.addi %4, %53 : vector<1x256xi32>
    %c16_i32_21 = arith.constant 16 : i32
    %55 = vector.broadcast %c16_i32_21 : i32 to vector<1x256xi32>
    %56 = arith.cmpi slt, %54, %55 : vector<1x256xi32>
    %57 = arith.andi %52, %56 : vector<1x256xi1>
    %cst_22 = arith.constant 0.000000e+00 : f32
    %58 = vector.shape_cast %57 : vector<1x256xi1> to vector<1x256xi1>
    %59 = vector.broadcast %58 : vector<1x256xi1> to vector<16x256xi1>
    %60 = vector.broadcast %cst_22 : f32 to vector<16x256xf32>
    %61 = arith.select %59, %40, %60 : vector<16x256xi1>, vector<16x256xf32>
    %c16 = arith.constant 16 : index
    %c0_23 = arith.constant 0 : index
    %62 = vector.load %arg12[%c16, %c0_23] : memref<144x256xf32, #tpu.memory_space<vmem>>, vector<16x256xf32>
    tpu.vector_store %arg12[%c16, %c0_23], %61 {strides = array<i32>} : memref<144x256xf32, #tpu.memory_space<vmem>>, vector<16x256xf32>,
    %c15_i32_24 = arith.constant 15 : i32
    %63 = tpu.dynamic_rotate %16 by %c15_i32_24 dim 1 : vector<16x256xf32>, i32 -> vector<16x256xf32>
    %c-16_i32_25 = arith.constant -16 : i32
    %64 = vector.broadcast %c-16_i32_25 : i32 to vector<1x256xi32>
    %65 = arith.addi %2, %64 : vector<1x256xi32>
    %c0_i32_26 = arith.constant 0 : i32
    %66 = vector.broadcast %c0_i32_26 : i32 to vector<1x256xi32>
    %67 = arith.cmpi sge, %65, %66 : vector<1x256xi32>
    %c256_i32_27 = arith.constant 256 : i32
    %68 = vector.broadcast %c256_i32_27 : i32 to vector<1x256xi32>
    %69 = arith.cmpi slt, %65, %68 : vector<1x256xi32>
    %70 = arith.andi %67, %69 : vector<1x256xi1>
    %c1_i32 = arith.constant 1 : i32
    %71 = vector.broadcast %c1_i32 : i32 to vector<1x256xi32>
    %72 = arith.addi %4, %71 : vector<1x256xi32>
    %c0_i32_28 = arith.constant 0 : i32
    %73 = vector.broadcast %c0_i32_28 : i32 to vector<1x256xi32>
    %74 = arith.cmpi sge, %72, %73 : vector<1x256xi32>
    %75 = arith.andi %70, %74 : vector<1x256xi1>
    %c1_i32_29 = arith.constant 1 : i32
    %76 = vector.broadcast %c1_i32_29 : i32 to vector<1x256xi32>
    %77 = arith.addi %4, %76 : vector<1x256xi32>
    %c16_i32_30 = arith.constant 16 : i32
    %78 = vector.broadcast %c16_i32_30 : i32 to vector<1x256xi32>
    %79 = arith.cmpi slt, %77, %78 : vector<1x256xi32>
    %80 = arith.andi %75, %79 : vector<1x256xi1>
    %cst_31 = arith.constant 0.000000e+00 : f32
    %81 = vector.shape_cast %80 : vector<1x256xi1> to vector<1x256xi1>
    %82 = vector.broadcast %81 : vector<1x256xi1> to vector<16x256xi1>
    %83 = vector.broadcast %cst_31 : f32 to vector<16x256xf32>
    %84 = arith.select %82, %63, %83 : vector<16x256xi1>, vector<16x256xf32>
    %c32 = arith.constant 32 : index
    %c0_32 = arith.constant 0 : index
    %85 = vector.load %arg12[%c32, %c0_32] : memref<144x256xf32, #tpu.memory_space<vmem>>, vector<16x256xf32>
    tpu.vector_store %arg12[%c32, %c0_32], %84 {strides = array<i32>} : memref<144x256xf32, #tpu.memory_space<vmem>>, vector<16x256xf32>,
    %c1_i32_33 = arith.constant 1 : i32
    %86 = tpu.dynamic_rotate %16 by %c1_i32_33 dim 1 : vector<16x256xf32>, i32 -> vector<16x256xf32>
    %c0_i32_34 = arith.constant 0 : i32
    %87 = vector.broadcast %c0_i32_34 : i32 to vector<1x256xi32>
    %88 = arith.addi %2, %87 : vector<1x256xi32>
    %c0_i32_35 = arith.constant 0 : i32
    %89 = vector.broadcast %c0_i32_35 : i32 to vector<1x256xi32>
    %90 = arith.cmpi sge, %88, %89 : vector<1x256xi32>
    %c256_i32_36 = arith.constant 256 : i32
    %91 = vector.broadcast %c256_i32_36 : i32 to vector<1x256xi32>
    %92 = arith.cmpi slt, %88, %91 : vector<1x256xi32>
    %93 = arith.andi %90, %92 : vector<1x256xi1>
    %c-1_i32_37 = arith.constant -1 : i32
    %94 = vector.broadcast %c-1_i32_37 : i32 to vector<1x256xi32>
    %95 = arith.addi %4, %94 : vector<1x256xi32>
    %c0_i32_38 = arith.constant 0 : i32
    %96 = vector.broadcast %c0_i32_38 : i32 to vector<1x256xi32>
    %97 = arith.cmpi sge, %95, %96 : vector<1x256xi32>
    %98 = arith.andi %93, %97 : vector<1x256xi1>
    %c-1_i32_39 = arith.constant -1 : i32
    %99 = vector.broadcast %c-1_i32_39 : i32 to vector<1x256xi32>
    %100 = arith.addi %4, %99 : vector<1x256xi32>
    %c16_i32_40 = arith.constant 16 : i32
    %101 = vector.broadcast %c16_i32_40 : i32 to vector<1x256xi32>
    %102 = arith.cmpi slt, %100, %101 : vector<1x256xi32>
    %103 = arith.andi %98, %102 : vector<1x256xi1>
    %cst_41 = arith.constant 0.000000e+00 : f32
    %104 = vector.shape_cast %103 : vector<1x256xi1> to vector<1x256xi1>
    %105 = vector.broadcast %104 : vector<1x256xi1> to vector<16x256xi1>
    %106 = vector.broadcast %cst_41 : f32 to vector<16x256xf32>
    %107 = arith.select %105, %86, %106 : vector<16x256xi1>, vector<16x256xf32>
    %c48 = arith.constant 48 : index
    %c0_42 = arith.constant 0 : index
    %108 = vector.load %arg12[%c48, %c0_42] : memref<144x256xf32, #tpu.memory_space<vmem>>, vector<16x256xf32>
    tpu.vector_store %arg12[%c48, %c0_42], %107 {strides = array<i32>} : memref<144x256xf32, #tpu.memory_space<vmem>>, vector<16x256xf32>,
    %c0_i32_43 = arith.constant 0 : i32
    %109 = vector.broadcast %c0_i32_43 : i32 to vector<1x256xi32>
    %110 = arith.addi %2, %109 : vector<1x256xi32>
    %c0_i32_44 = arith.constant 0 : i32
    %111 = vector.broadcast %c0_i32_44 : i32 to vector<1x256xi32>
    %112 = arith.cmpi sge, %110, %111 : vector<1x256xi32>
    %c256_i32_45 = arith.constant 256 : i32
    %113 = vector.broadcast %c256_i32_45 : i32 to vector<1x256xi32>
    %114 = arith.cmpi slt, %110, %113 : vector<1x256xi32>
    %115 = arith.andi %112, %114 : vector<1x256xi1>
    %c0_i32_46 = arith.constant 0 : i32
    %116 = vector.broadcast %c0_i32_46 : i32 to vector<1x256xi32>
    %117 = arith.addi %4, %116 : vector<1x256xi32>
    %c0_i32_47 = arith.constant 0 : i32
    %118 = vector.broadcast %c0_i32_47 : i32 to vector<1x256xi32>
    %119 = arith.cmpi sge, %117, %118 : vector<1x256xi32>
    %120 = arith.andi %115, %119 : vector<1x256xi1>
    %c0_i32_48 = arith.constant 0 : i32
    %121 = vector.broadcast %c0_i32_48 : i32 to vector<1x256xi32>
    %122 = arith.addi %4, %121 : vector<1x256xi32>
    %c16_i32_49 = arith.constant 16 : i32
    %123 = vector.broadcast %c16_i32_49 : i32 to vector<1x256xi32>
    %124 = arith.cmpi slt, %122, %123 : vector<1x256xi32>
    %125 = arith.andi %120, %124 : vector<1x256xi1>
    %cst_50 = arith.constant 0.000000e+00 : f32
    %126 = vector.shape_cast %125 : vector<1x256xi1> to vector<1x256xi1>
    %127 = vector.broadcast %126 : vector<1x256xi1> to vector<16x256xi1>
    %128 = vector.broadcast %cst_50 : f32 to vector<16x256xf32>
    %129 = arith.select %127, %16, %128 : vector<16x256xi1>, vector<16x256xf32>
    %c64 = arith.constant 64 : index
    %c0_51 = arith.constant 0 : index
    %130 = vector.load %arg12[%c64, %c0_51] : memref<144x256xf32, #tpu.memory_space<vmem>>, vector<16x256xf32>
    tpu.vector_store %arg12[%c64, %c0_51], %129 {strides = array<i32>} : memref<144x256xf32, #tpu.memory_space<vmem>>, vector<16x256xf32>,
    %c255_i32 = arith.constant 255 : i32
    %131 = tpu.dynamic_rotate %16 by %c255_i32 dim 1 : vector<16x256xf32>, i32 -> vector<16x256xf32>
    %c0_i32_52 = arith.constant 0 : i32
    %132 = vector.broadcast %c0_i32_52 : i32 to vector<1x256xi32>
    %133 = arith.addi %2, %132 : vector<1x256xi32>
    %c0_i32_53 = arith.constant 0 : i32
    %134 = vector.broadcast %c0_i32_53 : i32 to vector<1x256xi32>
    %135 = arith.cmpi sge, %133, %134 : vector<1x256xi32>
    %c256_i32_54 = arith.constant 256 : i32
    %136 = vector.broadcast %c256_i32_54 : i32 to vector<1x256xi32>
    %137 = arith.cmpi slt, %133, %136 : vector<1x256xi32>
    %138 = arith.andi %135, %137 : vector<1x256xi1>
    %c1_i32_55 = arith.constant 1 : i32
    %139 = vector.broadcast %c1_i32_55 : i32 to vector<1x256xi32>
    %140 = arith.addi %4, %139 : vector<1x256xi32>
    %c0_i32_56 = arith.constant 0 : i32
    %141 = vector.broadcast %c0_i32_56 : i32 to vector<1x256xi32>
    %142 = arith.cmpi sge, %140, %141 : vector<1x256xi32>
    %143 = arith.andi %138, %142 : vector<1x256xi1>
    %c1_i32_57 = arith.constant 1 : i32
    %144 = vector.broadcast %c1_i32_57 : i32 to vector<1x256xi32>
    %145 = arith.addi %4, %144 : vector<1x256xi32>
    %c16_i32_58 = arith.constant 16 : i32
    %146 = vector.broadcast %c16_i32_58 : i32 to vector<1x256xi32>
    %147 = arith.cmpi slt, %145, %146 : vector<1x256xi32>
    %148 = arith.andi %143, %147 : vector<1x256xi1>
    %cst_59 = arith.constant 0.000000e+00 : f32
    %149 = vector.shape_cast %148 : vector<1x256xi1> to vector<1x256xi1>
    %150 = vector.broadcast %149 : vector<1x256xi1> to vector<16x256xi1>
    %151 = vector.broadcast %cst_59 : f32 to vector<16x256xf32>
    %152 = arith.select %150, %131, %151 : vector<16x256xi1>, vector<16x256xf32>
    %c80 = arith.constant 80 : index
    %c0_60 = arith.constant 0 : index
    %153 = vector.load %arg12[%c80, %c0_60] : memref<144x256xf32, #tpu.memory_space<vmem>>, vector<16x256xf32>
    tpu.vector_store %arg12[%c80, %c0_60], %152 {strides = array<i32>} : memref<144x256xf32, #tpu.memory_space<vmem>>, vector<16x256xf32>,
    %c241_i32 = arith.constant 241 : i32
    %154 = tpu.dynamic_rotate %16 by %c241_i32 dim 1 : vector<16x256xf32>, i32 -> vector<16x256xf32>
    %c16_i32_61 = arith.constant 16 : i32
    %155 = vector.broadcast %c16_i32_61 : i32 to vector<1x256xi32>
    %156 = arith.addi %2, %155 : vector<1x256xi32>
    %c0_i32_62 = arith.constant 0 : i32
    %157 = vector.broadcast %c0_i32_62 : i32 to vector<1x256xi32>
    %158 = arith.cmpi sge, %156, %157 : vector<1x256xi32>
    %c256_i32_63 = arith.constant 256 : i32
    %159 = vector.broadcast %c256_i32_63 : i32 to vector<1x256xi32>
    %160 = arith.cmpi slt, %156, %159 : vector<1x256xi32>
    %161 = arith.andi %158, %160 : vector<1x256xi1>
    %c-1_i32_64 = arith.constant -1 : i32
    %162 = vector.broadcast %c-1_i32_64 : i32 to vector<1x256xi32>
    %163 = arith.addi %4, %162 : vector<1x256xi32>
    %c0_i32_65 = arith.constant 0 : i32
    %164 = vector.broadcast %c0_i32_65 : i32 to vector<1x256xi32>
    %165 = arith.cmpi sge, %163, %164 : vector<1x256xi32>
    %166 = arith.andi %161, %165 : vector<1x256xi1>
    %c-1_i32_66 = arith.constant -1 : i32
    %167 = vector.broadcast %c-1_i32_66 : i32 to vector<1x256xi32>
    %168 = arith.addi %4, %167 : vector<1x256xi32>
    %c16_i32_67 = arith.constant 16 : i32
    %169 = vector.broadcast %c16_i32_67 : i32 to vector<1x256xi32>
    %170 = arith.cmpi slt, %168, %169 : vector<1x256xi32>
    %171 = arith.andi %166, %170 : vector<1x256xi1>
    %cst_68 = arith.constant 0.000000e+00 : f32
    %172 = vector.shape_cast %171 : vector<1x256xi1> to vector<1x256xi1>
    %173 = vector.broadcast %172 : vector<1x256xi1> to vector<16x256xi1>
    %174 = vector.broadcast %cst_68 : f32 to vector<16x256xf32>
    %175 = arith.select %173, %154, %174 : vector<16x256xi1>, vector<16x256xf32>
    %c96 = arith.constant 96 : index
    %c0_69 = arith.constant 0 : index
    %176 = vector.load %arg12[%c96, %c0_69] : memref<144x256xf32, #tpu.memory_space<vmem>>, vector<16x256xf32>
    tpu.vector_store %arg12[%c96, %c0_69], %175 {strides = array<i32>} : memref<144x256xf32, #tpu.memory_space<vmem>>, vector<16x256xf32>,
    %c240_i32 = arith.constant 240 : i32
    %177 = tpu.dynamic_rotate %16 by %c240_i32 dim 1 : vector<16x256xf32>, i32 -> vector<16x256xf32>
    %c16_i32_70 = arith.constant 16 : i32
    %178 = vector.broadcast %c16_i32_70 : i32 to vector<1x256xi32>
    %179 = arith.addi %2, %178 : vector<1x256xi32>
    %c0_i32_71 = arith.constant 0 : i32
    %180 = vector.broadcast %c0_i32_71 : i32 to vector<1x256xi32>
    %181 = arith.cmpi sge, %179, %180 : vector<1x256xi32>
    %c256_i32_72 = arith.constant 256 : i32
    %182 = vector.broadcast %c256_i32_72 : i32 to vector<1x256xi32>
    %183 = arith.cmpi slt, %179, %182 : vector<1x256xi32>
    %184 = arith.andi %181, %183 : vector<1x256xi1>
    %c0_i32_73 = arith.constant 0 : i32
    %185 = vector.broadcast %c0_i32_73 : i32 to vector<1x256xi32>
    %186 = arith.addi %4, %185 : vector<1x256xi32>
    %c0_i32_74 = arith.constant 0 : i32
    %187 = vector.broadcast %c0_i32_74 : i32 to vector<1x256xi32>
    %188 = arith.cmpi sge, %186, %187 : vector<1x256xi32>
    %189 = arith.andi %184, %188 : vector<1x256xi1>
    %c0_i32_75 = arith.constant 0 : i32
    %190 = vector.broadcast %c0_i32_75 : i32 to vector<1x256xi32>
    %191 = arith.addi %4, %190 : vector<1x256xi32>
    %c16_i32_76 = arith.constant 16 : i32
    %192 = vector.broadcast %c16_i32_76 : i32 to vector<1x256xi32>
    %193 = arith.cmpi slt, %191, %192 : vector<1x256xi32>
    %194 = arith.andi %189, %193 : vector<1x256xi1>
    %cst_77 = arith.constant 0.000000e+00 : f32
    %195 = vector.shape_cast %194 : vector<1x256xi1> to vector<1x256xi1>
    %196 = vector.broadcast %195 : vector<1x256xi1> to vector<16x256xi1>
    %197 = vector.broadcast %cst_77 : f32 to vector<16x256xf32>
    %198 = arith.select %196, %177, %197 : vector<16x256xi1>, vector<16x256xf32>
    %c112 = arith.constant 112 : index
    %c0_78 = arith.constant 0 : index
    %199 = vector.load %arg12[%c112, %c0_78] : memref<144x256xf32, #tpu.memory_space<vmem>>, vector<16x256xf32>
    tpu.vector_store %arg12[%c112, %c0_78], %198 {strides = array<i32>} : memref<144x256xf32, #tpu.memory_space<vmem>>, vector<16x256xf32>,
    %c239_i32 = arith.constant 239 : i32
    %200 = tpu.dynamic_rotate %16 by %c239_i32 dim 1 : vector<16x256xf32>, i32 -> vector<16x256xf32>
    %c16_i32_79 = arith.constant 16 : i32
    %201 = vector.broadcast %c16_i32_79 : i32 to vector<1x256xi32>
    %202 = arith.addi %2, %201 : vector<1x256xi32>
    %c0_i32_80 = arith.constant 0 : i32
    %203 = vector.broadcast %c0_i32_80 : i32 to vector<1x256xi32>
    %204 = arith.cmpi sge, %202, %203 : vector<1x256xi32>
    %c256_i32_81 = arith.constant 256 : i32
    %205 = vector.broadcast %c256_i32_81 : i32 to vector<1x256xi32>
    %206 = arith.cmpi slt, %202, %205 : vector<1x256xi32>
    %207 = arith.andi %204, %206 : vector<1x256xi1>
    %c1_i32_82 = arith.constant 1 : i32
    %208 = vector.broadcast %c1_i32_82 : i32 to vector<1x256xi32>
    %209 = arith.addi %4, %208 : vector<1x256xi32>
    %c0_i32_83 = arith.constant 0 : i32
    %210 = vector.broadcast %c0_i32_83 : i32 to vector<1x256xi32>
    %211 = arith.cmpi sge, %209, %210 : vector<1x256xi32>
    %212 = arith.andi %207, %211 : vector<1x256xi1>
    %c1_i32_84 = arith.constant 1 : i32
    %213 = vector.broadcast %c1_i32_84 : i32 to vector<1x256xi32>
    %214 = arith.addi %4, %213 : vector<1x256xi32>
    %c16_i32_85 = arith.constant 16 : i32
    %215 = vector.broadcast %c16_i32_85 : i32 to vector<1x256xi32>
    %216 = arith.cmpi slt, %214, %215 : vector<1x256xi32>
    %217 = arith.andi %212, %216 : vector<1x256xi1>
    %cst_86 = arith.constant 0.000000e+00 : f32
    %218 = vector.shape_cast %217 : vector<1x256xi1> to vector<1x256xi1>
    %219 = vector.broadcast %218 : vector<1x256xi1> to vector<16x256xi1>
    %220 = vector.broadcast %cst_86 : f32 to vector<16x256xf32>
    %221 = arith.select %219, %200, %220 : vector<16x256xi1>, vector<16x256xf32>
    %c128 = arith.constant 128 : index
    %c0_87 = arith.constant 0 : index
    %222 = vector.load %arg12[%c128, %c0_87] : memref<144x256xf32, #tpu.memory_space<vmem>>, vector<16x256xf32>
    tpu.vector_store %arg12[%c128, %c0_87], %221 {strides = array<i32>} : memref<144x256xf32, #tpu.memory_space<vmem>>, vector<16x256xf32>,
    %c0_88 = arith.constant 0 : index
    %c0_89 = arith.constant 0 : index
    %223 = vector.load %arg5[%c0_88, %c0_89] : memref<24x144xf32, #tpu.memory_space<vmem>>, vector<24x144xf32>
    %c0_90 = arith.constant 0 : index
    %c0_91 = arith.constant 0 : index
    %224 = vector.load %arg12[%c0_90, %c0_91] : memref<144x256xf32, #tpu.memory_space<vmem>>, vector<144x256xf32>
    %cst_92 = arith.constant dense<0.000000e+00> : vector<24x256xf32>
    %225 = tpu.matmul %223, %224, %cst_92 {dimension_numbers = #tpu.dot_dimension_numbers<[1], [0], [0], [1], [0, 0, 1, 1], [], []>} : vector<24x144xf32>, vector<144x256xf32>, vector<24x256xf32> -> vector<24x256xf32>
    %c0_93 = arith.constant 0 : index
    %c0_94 = arith.constant 0 : index
    %226 = vector.load %arg6[%c0_93, %c0_94] : memref<24x1xf32, #tpu.memory_space<vmem>>, vector<24x1xf32>
    %227 = vector.broadcast %226 : vector<24x1xf32> to vector<24x256xf32>
    %228 = arith.mulf %225, %227 : vector<24x256xf32>
    %c0_95 = arith.constant 0 : index
    %c0_96 = arith.constant 0 : index
    %229 = vector.load %arg7[%c0_95, %c0_96] : memref<24x1xf32, #tpu.memory_space<vmem>>, vector<24x1xf32>
    %230 = vector.broadcast %229 : vector<24x1xf32> to vector<24x256xf32>
    %231 = arith.addf %228, %230 : vector<24x256xf32>
    %cst_97 = arith.constant 0.000000e+00 : f32
    %232 = vector.broadcast %cst_97 : f32 to vector<24x256xf32>
    %233 = arith.maximumf %231, %232 : vector<24x256xf32>
    %c17_i32_98 = arith.constant 17 : i32
    %234 = tpu.dynamic_rotate %1 by %c17_i32_98 dim 1 : vector<8x256xf32>, i32 -> vector<8x256xf32>
    %c-16_i32_99 = arith.constant -16 : i32
    %235 = vector.broadcast %c-16_i32_99 : i32 to vector<1x256xi32>
    %236 = arith.addi %2, %235 : vector<1x256xi32>
    %c0_i32_100 = arith.constant 0 : i32
    %237 = vector.broadcast %c0_i32_100 : i32 to vector<1x256xi32>
    %238 = arith.cmpi sge, %236, %237 : vector<1x256xi32>
    %c256_i32_101 = arith.constant 256 : i32
    %239 = vector.broadcast %c256_i32_101 : i32 to vector<1x256xi32>
    %240 = arith.cmpi slt, %236, %239 : vector<1x256xi32>
    %241 = arith.andi %238, %240 : vector<1x256xi1>
    %c-1_i32_102 = arith.constant -1 : i32
    %242 = vector.broadcast %c-1_i32_102 : i32 to vector<1x256xi32>
    %243 = arith.addi %4, %242 : vector<1x256xi32>
    %c0_i32_103 = arith.constant 0 : i32
    %244 = vector.broadcast %c0_i32_103 : i32 to vector<1x256xi32>
    %245 = arith.cmpi sge, %243, %244 : vector<1x256xi32>
    %246 = arith.andi %241, %245 : vector<1x256xi1>
    %c-1_i32_104 = arith.constant -1 : i32
    %247 = vector.broadcast %c-1_i32_104 : i32 to vector<1x256xi32>
    %248 = arith.addi %4, %247 : vector<1x256xi32>
    %c16_i32_105 = arith.constant 16 : i32
    %249 = vector.broadcast %c16_i32_105 : i32 to vector<1x256xi32>
    %250 = arith.cmpi slt, %248, %249 : vector<1x256xi32>
    %251 = arith.andi %246, %250 : vector<1x256xi1>
    %cst_106 = arith.constant 0xFF800000 : f32
    %252 = vector.shape_cast %251 : vector<1x256xi1> to vector<1x256xi1>
    %253 = vector.broadcast %252 : vector<1x256xi1> to vector<8x256xi1>
    %254 = vector.broadcast %cst_106 : f32 to vector<8x256xf32>
    %255 = arith.select %253, %234, %254 : vector<8x256xi1>, vector<8x256xf32>
    %256 = arith.maximumf %1, %255 : vector<8x256xf32>
    %c16_i32_107 = arith.constant 16 : i32
    %257 = tpu.dynamic_rotate %1 by %c16_i32_107 dim 1 : vector<8x256xf32>, i32 -> vector<8x256xf32>
    %c-16_i32_108 = arith.constant -16 : i32
    %258 = vector.broadcast %c-16_i32_108 : i32 to vector<1x256xi32>
    %259 = arith.addi %2, %258 : vector<1x256xi32>
    %c0_i32_109 = arith.constant 0 : i32
    %260 = vector.broadcast %c0_i32_109 : i32 to vector<1x256xi32>
    %261 = arith.cmpi sge, %259, %260 : vector<1x256xi32>
    %c256_i32_110 = arith.constant 256 : i32
    %262 = vector.broadcast %c256_i32_110 : i32 to vector<1x256xi32>
    %263 = arith.cmpi slt, %259, %262 : vector<1x256xi32>
    %264 = arith.andi %261, %263 : vector<1x256xi1>
    %c0_i32_111 = arith.constant 0 : i32
    %265 = vector.broadcast %c0_i32_111 : i32 to vector<1x256xi32>
    %266 = arith.addi %4, %265 : vector<1x256xi32>
    %c0_i32_112 = arith.constant 0 : i32
    %267 = vector.broadcast %c0_i32_112 : i32 to vector<1x256xi32>
    %268 = arith.cmpi sge, %266, %267 : vector<1x256xi32>
    %269 = arith.andi %264, %268 : vector<1x256xi1>
    %c0_i32_113 = arith.constant 0 : i32
    %270 = vector.broadcast %c0_i32_113 : i32 to vector<1x256xi32>
    %271 = arith.addi %4, %270 : vector<1x256xi32>
    %c16_i32_114 = arith.constant 16 : i32
    %272 = vector.broadcast %c16_i32_114 : i32 to vector<1x256xi32>
    %273 = arith.cmpi slt, %271, %272 : vector<1x256xi32>
    %274 = arith.andi %269, %273 : vector<1x256xi1>
    %cst_115 = arith.constant 0xFF800000 : f32
    %275 = vector.shape_cast %274 : vector<1x256xi1> to vector<1x256xi1>
    %276 = vector.broadcast %275 : vector<1x256xi1> to vector<8x256xi1>
    %277 = vector.broadcast %cst_115 : f32 to vector<8x256xf32>
    %278 = arith.select %276, %257, %277 : vector<8x256xi1>, vector<8x256xf32>
    %279 = arith.maximumf %256, %278 : vector<8x256xf32>
    %c15_i32_116 = arith.constant 15 : i32
    %280 = tpu.dynamic_rotate %1 by %c15_i32_116 dim 1 : vector<8x256xf32>, i32 -> vector<8x256xf32>
    %c-16_i32_117 = arith.constant -16 : i32
    %281 = vector.broadcast %c-16_i32_117 : i32 to vector<1x256xi32>
    %282 = arith.addi %2, %281 : vector<1x256xi32>
    %c0_i32_118 = arith.constant 0 : i32
    %283 = vector.broadcast %c0_i32_118 : i32 to vector<1x256xi32>
    %284 = arith.cmpi sge, %282, %283 : vector<1x256xi32>
    %c256_i32_119 = arith.constant 256 : i32
    %285 = vector.broadcast %c256_i32_119 : i32 to vector<1x256xi32>
    %286 = arith.cmpi slt, %282, %285 : vector<1x256xi32>
    %287 = arith.andi %284, %286 : vector<1x256xi1>
    %c1_i32_120 = arith.constant 1 : i32
    %288 = vector.broadcast %c1_i32_120 : i32 to vector<1x256xi32>
    %289 = arith.addi %4, %288 : vector<1x256xi32>
    %c0_i32_121 = arith.constant 0 : i32
    %290 = vector.broadcast %c0_i32_121 : i32 to vector<1x256xi32>
    %291 = arith.cmpi sge, %289, %290 : vector<1x256xi32>
    %292 = arith.andi %287, %291 : vector<1x256xi1>
    %c1_i32_122 = arith.constant 1 : i32
    %293 = vector.broadcast %c1_i32_122 : i32 to vector<1x256xi32>
    %294 = arith.addi %4, %293 : vector<1x256xi32>
    %c16_i32_123 = arith.constant 16 : i32
    %295 = vector.broadcast %c16_i32_123 : i32 to vector<1x256xi32>
    %296 = arith.cmpi slt, %294, %295 : vector<1x256xi32>
    %297 = arith.andi %292, %296 : vector<1x256xi1>
    %cst_124 = arith.constant 0xFF800000 : f32
    %298 = vector.shape_cast %297 : vector<1x256xi1> to vector<1x256xi1>
    %299 = vector.broadcast %298 : vector<1x256xi1> to vector<8x256xi1>
    %300 = vector.broadcast %cst_124 : f32 to vector<8x256xf32>
    %301 = arith.select %299, %280, %300 : vector<8x256xi1>, vector<8x256xf32>
    %302 = arith.maximumf %279, %301 : vector<8x256xf32>
    %c1_i32_125 = arith.constant 1 : i32
    %303 = tpu.dynamic_rotate %1 by %c1_i32_125 dim 1 : vector<8x256xf32>, i32 -> vector<8x256xf32>
    %c0_i32_126 = arith.constant 0 : i32
    %304 = vector.broadcast %c0_i32_126 : i32 to vector<1x256xi32>
    %305 = arith.addi %2, %304 : vector<1x256xi32>
    %c0_i32_127 = arith.constant 0 : i32
    %306 = vector.broadcast %c0_i32_127 : i32 to vector<1x256xi32>
    %307 = arith.cmpi sge, %305, %306 : vector<1x256xi32>
    %c256_i32_128 = arith.constant 256 : i32
    %308 = vector.broadcast %c256_i32_128 : i32 to vector<1x256xi32>
    %309 = arith.cmpi slt, %305, %308 : vector<1x256xi32>
    %310 = arith.andi %307, %309 : vector<1x256xi1>
    %c-1_i32_129 = arith.constant -1 : i32
    %311 = vector.broadcast %c-1_i32_129 : i32 to vector<1x256xi32>
    %312 = arith.addi %4, %311 : vector<1x256xi32>
    %c0_i32_130 = arith.constant 0 : i32
    %313 = vector.broadcast %c0_i32_130 : i32 to vector<1x256xi32>
    %314 = arith.cmpi sge, %312, %313 : vector<1x256xi32>
    %315 = arith.andi %310, %314 : vector<1x256xi1>
    %c-1_i32_131 = arith.constant -1 : i32
    %316 = vector.broadcast %c-1_i32_131 : i32 to vector<1x256xi32>
    %317 = arith.addi %4, %316 : vector<1x256xi32>
    %c16_i32_132 = arith.constant 16 : i32
    %318 = vector.broadcast %c16_i32_132 : i32 to vector<1x256xi32>
    %319 = arith.cmpi slt, %317, %318 : vector<1x256xi32>
    %320 = arith.andi %315, %319 : vector<1x256xi1>
    %cst_133 = arith.constant 0xFF800000 : f32
    %321 = vector.shape_cast %320 : vector<1x256xi1> to vector<1x256xi1>
    %322 = vector.broadcast %321 : vector<1x256xi1> to vector<8x256xi1>
    %323 = vector.broadcast %cst_133 : f32 to vector<8x256xf32>
    %324 = arith.select %322, %303, %323 : vector<8x256xi1>, vector<8x256xf32>
    %325 = arith.maximumf %302, %324 : vector<8x256xf32>
    %c255_i32_134 = arith.constant 255 : i32
    %326 = tpu.dynamic_rotate %1 by %c255_i32_134 dim 1 : vector<8x256xf32>, i32 -> vector<8x256xf32>
    %c0_i32_135 = arith.constant 0 : i32
    %327 = vector.broadcast %c0_i32_135 : i32 to vector<1x256xi32>
    %328 = arith.addi %2, %327 : vector<1x256xi32>
    %c0_i32_136 = arith.constant 0 : i32
    %329 = vector.broadcast %c0_i32_136 : i32 to vector<1x256xi32>
    %330 = arith.cmpi sge, %328, %329 : vector<1x256xi32>
    %c256_i32_137 = arith.constant 256 : i32
    %331 = vector.broadcast %c256_i32_137 : i32 to vector<1x256xi32>
    %332 = arith.cmpi slt, %328, %331 : vector<1x256xi32>
    %333 = arith.andi %330, %332 : vector<1x256xi1>
    %c1_i32_138 = arith.constant 1 : i32
    %334 = vector.broadcast %c1_i32_138 : i32 to vector<1x256xi32>
    %335 = arith.addi %4, %334 : vector<1x256xi32>
    %c0_i32_139 = arith.constant 0 : i32
    %336 = vector.broadcast %c0_i32_139 : i32 to vector<1x256xi32>
    %337 = arith.cmpi sge, %335, %336 : vector<1x256xi32>
    %338 = arith.andi %333, %337 : vector<1x256xi1>
    %c1_i32_140 = arith.constant 1 : i32
    %339 = vector.broadcast %c1_i32_140 : i32 to vector<1x256xi32>
    %340 = arith.addi %4, %339 : vector<1x256xi32>
    %c16_i32_141 = arith.constant 16 : i32
    %341 = vector.broadcast %c16_i32_141 : i32 to vector<1x256xi32>
    %342 = arith.cmpi slt, %340, %341 : vector<1x256xi32>
    %343 = arith.andi %338, %342 : vector<1x256xi1>
    %cst_142 = arith.constant 0xFF800000 : f32
    %344 = vector.shape_cast %343 : vector<1x256xi1> to vector<1x256xi1>
    %345 = vector.broadcast %344 : vector<1x256xi1> to vector<8x256xi1>
    %346 = vector.broadcast %cst_142 : f32 to vector<8x256xf32>
    %347 = arith.select %345, %326, %346 : vector<8x256xi1>, vector<8x256xf32>
    %348 = arith.maximumf %325, %347 : vector<8x256xf32>
    %c241_i32_143 = arith.constant 241 : i32
    %349 = tpu.dynamic_rotate %1 by %c241_i32_143 dim 1 : vector<8x256xf32>, i32 -> vector<8x256xf32>
    %c16_i32_144 = arith.constant 16 : i32
    %350 = vector.broadcast %c16_i32_144 : i32 to vector<1x256xi32>
    %351 = arith.addi %2, %350 : vector<1x256xi32>
    %c0_i32_145 = arith.constant 0 : i32
    %352 = vector.broadcast %c0_i32_145 : i32 to vector<1x256xi32>
    %353 = arith.cmpi sge, %351, %352 : vector<1x256xi32>
    %c256_i32_146 = arith.constant 256 : i32
    %354 = vector.broadcast %c256_i32_146 : i32 to vector<1x256xi32>
    %355 = arith.cmpi slt, %351, %354 : vector<1x256xi32>
    %356 = arith.andi %353, %355 : vector<1x256xi1>
    %c-1_i32_147 = arith.constant -1 : i32
    %357 = vector.broadcast %c-1_i32_147 : i32 to vector<1x256xi32>
    %358 = arith.addi %4, %357 : vector<1x256xi32>
    %c0_i32_148 = arith.constant 0 : i32
    %359 = vector.broadcast %c0_i32_148 : i32 to vector<1x256xi32>
    %360 = arith.cmpi sge, %358, %359 : vector<1x256xi32>
    %361 = arith.andi %356, %360 : vector<1x256xi1>
    %c-1_i32_149 = arith.constant -1 : i32
    %362 = vector.broadcast %c-1_i32_149 : i32 to vector<1x256xi32>
    %363 = arith.addi %4, %362 : vector<1x256xi32>
    %c16_i32_150 = arith.constant 16 : i32
    %364 = vector.broadcast %c16_i32_150 : i32 to vector<1x256xi32>
    %365 = arith.cmpi slt, %363, %364 : vector<1x256xi32>
    %366 = arith.andi %361, %365 : vector<1x256xi1>
    %cst_151 = arith.constant 0xFF800000 : f32
    %367 = vector.shape_cast %366 : vector<1x256xi1> to vector<1x256xi1>
    %368 = vector.broadcast %367 : vector<1x256xi1> to vector<8x256xi1>
    %369 = vector.broadcast %cst_151 : f32 to vector<8x256xf32>
    %370 = arith.select %368, %349, %369 : vector<8x256xi1>, vector<8x256xf32>
    %371 = arith.maximumf %348, %370 : vector<8x256xf32>
    %c240_i32_152 = arith.constant 240 : i32
    %372 = tpu.dynamic_rotate %1 by %c240_i32_152 dim 1 : vector<8x256xf32>, i32 -> vector<8x256xf32>
    %c16_i32_153 = arith.constant 16 : i32
    %373 = vector.broadcast %c16_i32_153 : i32 to vector<1x256xi32>
    %374 = arith.addi %2, %373 : vector<1x256xi32>
    %c0_i32_154 = arith.constant 0 : i32
    %375 = vector.broadcast %c0_i32_154 : i32 to vector<1x256xi32>
    %376 = arith.cmpi sge, %374, %375 : vector<1x256xi32>
    %c256_i32_155 = arith.constant 256 : i32
    %377 = vector.broadcast %c256_i32_155 : i32 to vector<1x256xi32>
    %378 = arith.cmpi slt, %374, %377 : vector<1x256xi32>
    %379 = arith.andi %376, %378 : vector<1x256xi1>
    %c0_i32_156 = arith.constant 0 : i32
    %380 = vector.broadcast %c0_i32_156 : i32 to vector<1x256xi32>
    %381 = arith.addi %4, %380 : vector<1x256xi32>
    %c0_i32_157 = arith.constant 0 : i32
    %382 = vector.broadcast %c0_i32_157 : i32 to vector<1x256xi32>
    %383 = arith.cmpi sge, %381, %382 : vector<1x256xi32>
    %384 = arith.andi %379, %383 : vector<1x256xi1>
    %c0_i32_158 = arith.constant 0 : i32
    %385 = vector.broadcast %c0_i32_158 : i32 to vector<1x256xi32>
    %386 = arith.addi %4, %385 : vector<1x256xi32>
    %c16_i32_159 = arith.constant 16 : i32
    %387 = vector.broadcast %c16_i32_159 : i32 to vector<1x256xi32>
    %388 = arith.cmpi slt, %386, %387 : vector<1x256xi32>
    %389 = arith.andi %384, %388 : vector<1x256xi1>
    %cst_160 = arith.constant 0xFF800000 : f32
    %390 = vector.shape_cast %389 : vector<1x256xi1> to vector<1x256xi1>
    %391 = vector.broadcast %390 : vector<1x256xi1> to vector<8x256xi1>
    %392 = vector.broadcast %cst_160 : f32 to vector<8x256xf32>
    %393 = arith.select %391, %372, %392 : vector<8x256xi1>, vector<8x256xf32>
    %394 = arith.maximumf %371, %393 : vector<8x256xf32>
    %c239_i32_161 = arith.constant 239 : i32
    %395 = tpu.dynamic_rotate %1 by %c239_i32_161 dim 1 : vector<8x256xf32>, i32 -> vector<8x256xf32>
    %c16_i32_162 = arith.constant 16 : i32
    %396 = vector.broadcast %c16_i32_162 : i32 to vector<1x256xi32>
    %397 = arith.addi %2, %396 : vector<1x256xi32>
    %c0_i32_163 = arith.constant 0 : i32
    %398 = vector.broadcast %c0_i32_163 : i32 to vector<1x256xi32>
    %399 = arith.cmpi sge, %397, %398 : vector<1x256xi32>
    %c256_i32_164 = arith.constant 256 : i32
    %400 = vector.broadcast %c256_i32_164 : i32 to vector<1x256xi32>
    %401 = arith.cmpi slt, %397, %400 : vector<1x256xi32>
    %402 = arith.andi %399, %401 : vector<1x256xi1>
    %c1_i32_165 = arith.constant 1 : i32
    %403 = vector.broadcast %c1_i32_165 : i32 to vector<1x256xi32>
    %404 = arith.addi %4, %403 : vector<1x256xi32>
    %c0_i32_166 = arith.constant 0 : i32
    %405 = vector.broadcast %c0_i32_166 : i32 to vector<1x256xi32>
    %406 = arith.cmpi sge, %404, %405 : vector<1x256xi32>
    %407 = arith.andi %402, %406 : vector<1x256xi1>
    %c1_i32_167 = arith.constant 1 : i32
    %408 = vector.broadcast %c1_i32_167 : i32 to vector<1x256xi32>
    %409 = arith.addi %4, %408 : vector<1x256xi32>
    %c16_i32_168 = arith.constant 16 : i32
    %410 = vector.broadcast %c16_i32_168 : i32 to vector<1x256xi32>
    %411 = arith.cmpi slt, %409, %410 : vector<1x256xi32>
    %412 = arith.andi %407, %411 : vector<1x256xi1>
    %cst_169 = arith.constant 0xFF800000 : f32
    %413 = vector.shape_cast %412 : vector<1x256xi1> to vector<1x256xi1>
    %414 = vector.broadcast %413 : vector<1x256xi1> to vector<8x256xi1>
    %415 = vector.broadcast %cst_169 : f32 to vector<8x256xf32>
    %416 = arith.select %414, %395, %415 : vector<8x256xi1>, vector<8x256xf32>
    %417 = arith.maximumf %394, %416 : vector<8x256xf32>
    %c0_170 = arith.constant 0 : index
    %c0_171 = arith.constant 0 : index
    %418 = vector.load %arg8[%c0_170, %c0_171] : memref<8x8xf32, #tpu.memory_space<vmem>>, vector<8x8xf32>
    %cst_172 = arith.constant dense<0.000000e+00> : vector<8x256xf32>
    %419 = tpu.matmul %418, %417, %cst_172 {dimension_numbers = #tpu.dot_dimension_numbers<[1], [0], [0], [1], [0, 0, 1, 1], [], []>} : vector<8x8xf32>, vector<8x256xf32>, vector<8x256xf32> -> vector<8x256xf32>
    %c0_173 = arith.constant 0 : index
    %c0_174 = arith.constant 0 : index
    %420 = vector.load %arg9[%c0_173, %c0_174] : memref<8x1xf32, #tpu.memory_space<vmem>>, vector<8x1xf32>
    %421 = vector.broadcast %420 : vector<8x1xf32> to vector<8x256xf32>
    %422 = arith.mulf %419, %421 : vector<8x256xf32>
    %c0_175 = arith.constant 0 : index
    %c0_176 = arith.constant 0 : index
    %423 = vector.load %arg10[%c0_175, %c0_176] : memref<8x1xf32, #tpu.memory_space<vmem>>, vector<8x1xf32>
    %424 = vector.broadcast %423 : vector<8x1xf32> to vector<8x256xf32>
    %425 = arith.addf %422, %424 : vector<8x256xf32>
    %cst_177 = arith.constant 0.000000e+00 : f32
    %426 = vector.broadcast %cst_177 : f32 to vector<8x256xf32>
    %427 = arith.maximumf %425, %426 : vector<8x256xf32>
    %428 = tpu.concatenate %15, %233, %427 in 0 : vector<8x256xf32>, vector<24x256xf32>, vector<8x256xf32> -> vector<40x256xf32>
    %c0_178 = arith.constant 0 : index
    %c0_179 = arith.constant 0 : index
    %c0_180 = arith.constant 0 : index
    %429 = vector.load %arg11[%c0_178, %c0_179, %c0_180] : memref<1x40x256xf32, #tpu.memory_space<vmem>>, vector<1x40x256xf32>
    %430 = vector.shape_cast %429 : vector<1x40x256xf32> to vector<40x256xf32>
    %431 = vector.shape_cast %428 : vector<40x256xf32> to vector<1x40x256xf32>
    tpu.vector_store %arg11[%c0_178, %c0_179, %c0_180], %431 {strides = array<i32>} : memref<1x40x256xf32, #tpu.memory_space<vmem>>, vector<1x40x256xf32>,
    return
  }
  func.func @transform_0(%arg0: i32) -> (i32, i32, i32) {
    %c0_i32 = arith.constant 0 : i32
    %c0_i32_0 = arith.constant 0 : i32
    %c0_i32_1 = arith.constant 0 : i32
    return %arg0, %c0_i32, %c0_i32_0 : i32, i32, i32
  }
  func.func @transform_1(%arg0: i32) -> (i32, i32) {
    %c0_i32 = arith.constant 0 : i32
    %c0_i32_0 = arith.constant 0 : i32
    %c0_i32_1 = arith.constant 0 : i32
    return %c0_i32, %c0_i32_0 : i32, i32
  }
  func.func @transform_2(%arg0: i32) -> (i32, i32) {
    %c0_i32 = arith.constant 0 : i32
    %c0_i32_0 = arith.constant 0 : i32
    %c0_i32_1 = arith.constant 0 : i32
    return %c0_i32, %c0_i32_0 : i32, i32
  }
  func.func @transform_3(%arg0: i32) -> (i32, i32) {
    %c0_i32 = arith.constant 0 : i32
    %c0_i32_0 = arith.constant 0 : i32
    %c0_i32_1 = arith.constant 0 : i32
    return %c0_i32, %c0_i32_0 : i32, i32
  }
  func.func @transform_4(%arg0: i32) -> (i32, i32) {
    %c0_i32 = arith.constant 0 : i32
    %c0_i32_0 = arith.constant 0 : i32
    %c0_i32_1 = arith.constant 0 : i32
    return %c0_i32, %c0_i32_0 : i32, i32
  }
  func.func @transform_5(%arg0: i32) -> (i32, i32) {
    %c0_i32 = arith.constant 0 : i32
    %c0_i32_0 = arith.constant 0 : i32
    %c0_i32_1 = arith.constant 0 : i32
    return %c0_i32, %c0_i32_0 : i32, i32
  }
  func.func @transform_6(%arg0: i32) -> (i32, i32) {
    %c0_i32 = arith.constant 0 : i32
    %c0_i32_0 = arith.constant 0 : i32
    %c0_i32_1 = arith.constant 0 : i32
    return %c0_i32, %c0_i32_0 : i32, i32
  }
  func.func @transform_7(%arg0: i32) -> (i32, i32) {
    %c0_i32 = arith.constant 0 : i32
    %c0_i32_0 = arith.constant 0 : i32
    %c0_i32_1 = arith.constant 0 : i32
    return %c0_i32, %c0_i32_0 : i32, i32
  }
  func.func @transform_8(%arg0: i32) -> (i32, i32) {
    %c0_i32 = arith.constant 0 : i32
    %c0_i32_0 = arith.constant 0 : i32
    %c0_i32_1 = arith.constant 0 : i32
    return %c0_i32, %c0_i32_0 : i32, i32
  }
  func.func @transform_9(%arg0: i32) -> (i32, i32) {
    %c0_i32 = arith.constant 0 : i32
    %c0_i32_0 = arith.constant 0 : i32
    %c0_i32_1 = arith.constant 0 : i32
    return %c0_i32, %c0_i32_0 : i32, i32
  }
  func.func @transform_10(%arg0: i32) -> (i32, i32, i32) {
    %c0_i32 = arith.constant 0 : i32
    %c0_i32_0 = arith.constant 0 : i32
    %c0_i32_1 = arith.constant 0 : i32
    return %arg0, %c0_i32, %c0_i32_0 : i32, i32, i32
  }
}

</mosaic_0001>

<llo_original>
// kernel: inception_forward.1
$region0: #{inception_forward.1}
  #allocation0 [shape = 'u32[]', space=smem, size = 0x4, offset = 0x4, fixed_abs, tag = 'smem constant byte address 0x4 - core index']
  #allocation1 [shape = 'u32[144,128]{1,0:T(1,128)}', space=vmem, size = 0x12000, scoped, tag = 'internal scratch']
  #allocation2 [shape = 'f32[144,256]{1,0:T(8,128)}', space=vmem, size = 0x24000, scoped, tag = 'scratch operand']
  %s0 = inlined_call_operand.vmem [shape: f32[2,8,256], index: 0, kind: input, shape index: {}]
  %s1 = inlined_call_operand.vmem [shape: f32[24,8], index: 1, kind: input, shape index: {}]
  %s2 = inlined_call_operand.vmem [shape: f32[24,1], index: 2, kind: input, shape index: {}]
  %s3 = inlined_call_operand.vmem [shape: f32[24,1], index: 3, kind: input, shape index: {}]
  %s4 = inlined_call_operand.vmem [shape: f32[24,144], index: 4, kind: input, shape index: {}]
  %s5 = inlined_call_operand.vmem [shape: f32[24,1], index: 5, kind: input, shape index: {}]
  %s6 = inlined_call_operand.vmem [shape: f32[24,1], index: 6, kind: input, shape index: {}]
  %s7 = inlined_call_operand.vmem [shape: f32[8,8], index: 7, kind: input, shape index: {}]
  %s8 = inlined_call_operand.vmem [shape: f32[8,1], index: 8, kind: input, shape index: {}]
  %s9 = inlined_call_operand.vmem [shape: f32[8,1], index: 9, kind: input, shape index: {}]
  %s10 = inlined_call_operand.vmem [shape: f32[2,40,256], index: 10, kind: output, shape index: {}]
  %s11 = sld [smem:[#allocation0]]
  $region73: #{inception_forward.1} parent=0
    _
  %s13 = ssub.s32 1, %s11
  %s14 = scalar_select 0, %s13, %s11
  loop: start=0, step=1, limit=4
  $region2: #{inception_forward.1} parent=0 // loop_pre_header
    _
  $region3: #{inception_forward.1} parent=0 // loop_header
    %s16 = sphi 0, %s20
    %p17 = scmp.ge.s32.totalorder %s16, 4
    %s26 = sphi 0, %s28
    %s29 = sphi 0, %s26
    %s30 = sphi 0, %s29
    %s46 = sphi 0, %s30
    %s50 = sphi 0, %s50
    %s52 = sphi 0, %s50
    %s53 = sphi 0, %s52
    %s67 = sphi 0, %s53
    %s71 = sphi 0, %s71
    %s73 = sphi 0, %s71
    %s74 = sphi 0, %s73
    %s88 = sphi 0, %s74
    %s92 = sphi 0, %s92
    %s94 = sphi 0, %s92
    %s95 = sphi 0, %s94
    %s109 = sphi 0, %s95
    %s113 = sphi 0, %s113
    %s115 = sphi 0, %s113
    %s116 = sphi 0, %s115
    %s130 = sphi 0, %s116
    %s134 = sphi 0, %s134
    %s136 = sphi 0, %s134
    %s137 = sphi 0, %s136
    %s151 = sphi 0, %s137
    %s155 = sphi 0, %s155
    %s157 = sphi 0, %s155
    %s158 = sphi 0, %s157
    %s172 = sphi 0, %s158
    %s176 = sphi 0, %s176
    %s178 = sphi 0, %s176
    %s179 = sphi 0, %s178
    %s193 = sphi 0, %s179
    %s197 = sphi 0, %s197
    %s199 = sphi 0, %s197
    %s200 = sphi 0, %s199
    %s214 = sphi 0, %s200
    %s218 = sphi 0, %s218
    %s220 = sphi 0, %s218
    %s221 = sphi 0, %s220
    %s235 = sphi 0, %s221
    %s241 = sphi 0, %s243
    %s244 = sphi 0, %s241
    %s245 = sphi 0, %s244
    %s261 = sphi 0, %s245
  $region4: #{inception_forward.1} parent=0 // loop_header_branch
    %19 = sbr.rel (%p17) target = $region8
  $region5: #{inception_forward.1} parent=0 // loop_body
    %s21 = ssub.s32 %s16, 1
    %s22 = ssub.s32 %s16, 2
    %s23 = sadd.s32 %s16, 1
    %s24 = ssub.s32 %s16, %s23
    %p25 = scmp.eq.s32.totalorder %s24, 0
    %s27 = sadd.s32 %s26, 1
    %s28 = scalar_select %p25, %s26, %s27
    %p31 = pneg %p25
    %p32 = scmp.eq.s32.totalorder %s16, 1
    %p33 = por %p31, %p32
    %p34 = scmp.ne.s32.totalorder %s26, %s29
    %p35 = scmp.eq.s32.totalorder %s16, 0
    %p36 = por %p34, %p35
    %p37 = scmp.ne.s32.totalorder %s26, %s29
    %p38 = scmp.eq.s32.totalorder %s21, 1
    %p39 = por %p37, %p38
    %p40 = scmp.ne.s32.totalorder %s29, %s30
    %p41 = scmp.eq.s32.totalorder %s21, 0
    %p42 = por %p40, %p41
    %p43 = scmp.ne.s32.totalorder %s29, %s30
    %p44 = scmp.eq.s32.totalorder %s22, 1
    %p45 = por %p43, %p44
    %p47 = scmp.ne.s32.totalorder %s30, %s46
    %p48 = scmp.eq.s32.totalorder %s22, 0
    %p49 = por %p47, %p48
    %s51 = sadd.s32 %s50, 1
    %p54 = scmp.eq.s32.totalorder %s16, 1
    %p55 = scmp.ne.s32.totalorder %s50, %s52
    %p56 = scmp.eq.s32.totalorder %s16, 0
    %p57 = por %p55, %p56
    %p58 = scmp.ne.s32.totalorder %s50, %s52
    %p59 = scmp.eq.s32.totalorder %s21, 1
    %p60 = por %p58, %p59
    %p61 = scmp.ne.s32.totalorder %s52, %s53
    %p62 = scmp.eq.s32.totalorder %s21, 0
    %p63 = por %p61, %p62
    %p64 = scmp.ne.s32.totalorder %s52, %s53
    %p65 = scmp.eq.s32.totalorder %s22, 1
    %p66 = por %p64, %p65
    %p68 = scmp.ne.s32.totalorder %s53, %s67
    %p69 = scmp.eq.s32.totalorder %s22, 0
    %p70 = por %p68, %p69
    %s72 = sadd.s32 %s71, 1
    %p75 = scmp.eq.s32.totalorder %s16, 1
    %p76 = scmp.ne.s32.totalorder %s71, %s73
    %p77 = scmp.eq.s32.totalorder %s16, 0
    %p78 = por %p76, %p77
    %p79 = scmp.ne.s32.totalorder %s71, %s73
    %p80 = scmp.eq.s32.totalorder %s21, 1
    %p81 = por %p79, %p80
    %p82 = scmp.ne.s32.totalorder %s73, %s74
    %p83 = scmp.eq.s32.totalorder %s21, 0
    %p84 = por %p82, %p83
    %p85 = scmp.ne.s32.totalorder %s73, %s74
    %p86 = scmp.eq.s32.totalorder %s22, 1
    %p87 = por %p85, %p86
    %p89 = scmp.ne.s32.totalorder %s74, %s88
    %p90 = scmp.eq.s32.totalorder %s22, 0
    %p91 = por %p89, %p90
    %s93 = sadd.s32 %s92, 1
    %p96 = scmp.eq.s32.totalorder %s16, 1
    %p97 = scmp.ne.s32.totalorder %s92, %s94
    %p98 = scmp.eq.s32.totalorder %s16, 0
    %p99 = por %p97, %p98
    %p100 = scmp.ne.s32.totalorder %s92, %s94
    %p101 = scmp.eq.s32.totalorder %s21, 1
    %p102 = por %p100, %p101
    %p103 = scmp.ne.s32.totalorder %s94, %s95
    %p104 = scmp.eq.s32.totalorder %s21, 0
    %p105 = por %p103, %p104
    %p106 = scmp.ne.s32.totalorder %s94, %s95
    %p107 = scmp.eq.s32.totalorder %s22, 1
    %p108 = por %p106, %p107
    %p110 = scmp.ne.s32.totalorder %s95, %s109
    %p111 = scmp.eq.s32.totalorder %s22, 0
    %p112 = por %p110, %p111
    %s114 = sadd.s32 %s113, 1
    %p117 = scmp.eq.s32.totalorder %s16, 1
    %p118 = scmp.ne.s32.totalorder %s113, %s115
    %p119 = scmp.eq.s32.totalorder %s16, 0
    %p120 = por %p118, %p119
    %p121 = scmp.ne.s32.totalorder %s113, %s115
    %p122 = scmp.eq.s32.totalorder %s21, 1
    %p123 = por %p121, %p122
    %p124 = scmp.ne.s32.totalorder %s115, %s116
    %p125 = scmp.eq.s32.totalorder %s21, 0
    %p126 = por %p124, %p125
    %p127 = scmp.ne.s32.totalorder %s115, %s116
    %p128 = scmp.eq.s32.totalorder %s22, 1
    %p129 = por %p127, %p128
    %p131 = scmp.ne.s32.totalorder %s116, %s130
    %p132 = scmp.eq.s32.totalorder %s22, 0
    %p133 = por %p131, %p132
    %s135 = sadd.s32 %s134, 1
    %p138 = scmp.eq.s32.totalorder %s16, 1
    %p139 = scmp.ne.s32.totalorder %s134, %s136
    %p140 = scmp.eq.s32.totalorder %s16, 0
    %p141 = por %p139, %p140
    %p142 = scmp.ne.s32.totalorder %s134, %s136
    %p143 = scmp.eq.s32.totalorder %s21, 1
    %p144 = por %p142, %p143
    %p145 = scmp.ne.s32.totalorder %s136, %s137
    %p146 = scmp.eq.s32.totalorder %s21, 0
    %p147 = por %p145, %p146
    %p148 = scmp.ne.s32.totalorder %s136, %s137
    %p149 = scmp.eq.s32.totalorder %s22, 1
    %p150 = por %p148, %p149
    %p152 = scmp.ne.s32.totalorder %s137, %s151
    %p153 = scmp.eq.s32.totalorder %s22, 0
    %p154 = por %p152, %p153
    %s156 = sadd.s32 %s155, 1
    %p159 = scmp.eq.s32.totalorder %s16, 1
    %p160 = scmp.ne.s32.totalorder %s155, %s157
    %p161 = scmp.eq.s32.totalorder %s16, 0
    %p162 = por %p160, %p161
    %p163 = scmp.ne.s32.totalorder %s155, %s157
    %p164 = scmp.eq.s32.totalorder %s21, 1
    %p165 = por %p163, %p164
    %p166 = scmp.ne.s32.totalorder %s157, %s158
    %p167 = scmp.eq.s32.totalorder %s21, 0
    %p168 = por %p166, %p167
    %p169 = scmp.ne.s32.totalorder %s157, %s158
    %p170 = scmp.eq.s32.totalorder %s22, 1
    %p171 = por %p169, %p170
    %p173 = scmp.ne.s32.totalorder %s158, %s172
    %p174 = scmp.eq.s32.totalorder %s22, 0
    %p175 = por %p173, %p174
    %s177 = sadd.s32 %s176, 1
    %p180 = scmp.eq.s32.totalorder %s16, 1
    %p181 = scmp.ne.s32.totalorder %s176, %s178
    %p182 = scmp.eq.s32.totalorder %s16, 0
    %p183 = por %p181, %p182
    %p184 = scmp.ne.s32.totalorder %s176, %s178
    %p185 = scmp.eq.s32.totalorder %s21, 1
    %p186 = por %p184, %p185
    %p187 = scmp.ne.s32.totalorder %s178, %s179
    %p188 = scmp.eq.s32.totalorder %s21, 0
    %p189 = por %p187, %p188
    %p190 = scmp.ne.s32.totalorder %s178, %s179
    %p191 = scmp.eq.s32.totalorder %s22, 1
    %p192 = por %p190, %p191
    %p194 = scmp.ne.s32.totalorder %s179, %s193
    %p195 = scmp.eq.s32.totalorder %s22, 0
    %p196 = por %p194, %p195
    %s198 = sadd.s32 %s197, 1
    %p201 = scmp.eq.s32.totalorder %s16, 1
    %p202 = scmp.ne.s32.totalorder %s197, %s199
    %p203 = scmp.eq.s32.totalorder %s16, 0
    %p204 = por %p202, %p203
    %p205 = scmp.ne.s32.totalorder %s197, %s199
    %p206 = scmp.eq.s32.totalorder %s21, 1
    %p207 = por %p205, %p206
    %p208 = scmp.ne.s32.totalorder %s199, %s200
    %p209 = scmp.eq.s32.totalorder %s21, 0
    %p210 = por %p208, %p209
    %p211 = scmp.ne.s32.totalorder %s199, %s200
    %p212 = scmp.eq.s32.totalorder %s22, 1
    %p213 = por %p211, %p212
    %p215 = scmp.ne.s32.totalorder %s200, %s214
    %p216 = scmp.eq.s32.totalorder %s22, 0
    %p217 = por %p215, %p216
    %s219 = sadd.s32 %s218, 1
    %p222 = scmp.eq.s32.totalorder %s16, 1
    %p223 = scmp.ne.s32.totalorder %s218, %s220
    %p224 = scmp.eq.s32.totalorder %s16, 0
    %p225 = por %p223, %p224
    %p226 = scmp.ne.s32.totalorder %s218, %s220
    %p227 = scmp.eq.s32.totalorder %s21, 1
    %p228 = por %p226, %p227
    %p229 = scmp.ne.s32.totalorder %s220, %s221
    %p230 = scmp.eq.s32.totalorder %s21, 0
    %p231 = por %p229, %p230
    %p232 = scmp.ne.s32.totalorder %s220, %s221
    %p233 = scmp.eq.s32.totalorder %s22, 1
    %p234 = por %p232, %p233
    %p236 = scmp.ne.s32.totalorder %s221, %s235
    %p237 = scmp.eq.s32.totalorder %s22, 0
    %p238 = por %p236, %p237
    %s239 = ssub.s32 %s16, %s23
    %p240 = scmp.eq.s32.totalorder %s239, 0
    %s242 = sadd.s32 %s241, 1
    %s243 = scalar_select %p240, %s241, %s242
    %p246 = pneg %p240
    %p247 = scmp.eq.s32.totalorder %s16, 1
    %p248 = por %p246, %p247
    %p249 = scmp.ne.s32.totalorder %s241, %s244
    %p250 = scmp.eq.s32.totalorder %s16, 0
    %p251 = por %p249, %p250
    %p252 = scmp.ne.s32.totalorder %s241, %s244
    %p253 = scmp.eq.s32.totalorder %s21, 1
    %p254 = por %p252, %p253
    %p255 = scmp.ne.s32.totalorder %s244, %s245
    %p256 = scmp.eq.s32.totalorder %s21, 0
    %p257 = por %p255, %p256
    %p258 = scmp.ne.s32.totalorder %s244, %s245
    %p259 = scmp.eq.s32.totalorder %s22, 1
    %p260 = por %p258, %p259
    %p262 = scmp.ne.s32.totalorder %s245, %s261
    %p263 = scmp.eq.s32.totalorder %s22, 0
    %p264 = por %p262, %p263
    %p265 = scmp.le.s32.totalorder 1, %s16
    %p266 = scmp.lt.s32.totalorder %s16, 3
    %p267 = pnand %p265, %p266
    %p268 = pneg %p267
    // Predicated region
    $region9: #{inception_forward.1} parent=5 // pred_check
      _
    $region10: #{inception_forward.1} parent=5 // pred_check_branch
      %270 = sbr.rel (%p267) target = $region12
    $region11: #{inception_forward.1} parent=5 // pred_region
      %s271 = ssub.s32 %s16, 1
      // Predicated region
      $region13: #{inception_forward.1} parent=11 // pred_check
        %p272 = pneg %p63
      $region14: #{inception_forward.1} parent=11 // pred_check_branch
        %274 = sbr.rel (%p272) target = $region16
      $region15: #{inception_forward.1} parent=11 // pred_region
        _
      $region16: #{inception_forward.1} parent=11 // pred_fallthru
        _
      // Predicated region
      $region17: #{inception_forward.1} parent=11 // pred_check
        %p275 = pneg %p84
      $region18: #{inception_forward.1} parent=11 // pred_check_branch
        %277 = sbr.rel (%p275) target = $region20
      $region19: #{inception_forward.1} parent=11 // pred_region
        _
      $region20: #{inception_forward.1} parent=11 // pred_fallthru
        _
      // Predicated region
      $region21: #{inception_forward.1} parent=11 // pred_check
        %p278 = pneg %p105
      $region22: #{inception_forward.1} parent=11 // pred_check_branch
        %280 = sbr.rel (%p278) target = $region24
      $region23: #{inception_forward.1} parent=11 // pred_region
        _
      $region24: #{inception_forward.1} parent=11 // pred_fallthru
        _
      // Predicated region
      $region25: #{inception_forward.1} parent=11 // pred_check
        %p281 = pneg %p126
      $region26: #{inception_forward.1} parent=11 // pred_check_branch
        %283 = sbr.rel (%p281) target = $region28
      $region27: #{inception_forward.1} parent=11 // pred_region
        _
      $region28: #{inception_forward.1} parent=11 // pred_fallthru
        _
      // Predicated region
      $region29: #{inception_forward.1} parent=11 // pred_check
        %p284 = pneg %p147
      $region30: #{inception_forward.1} parent=11 // pred_check_branch
        %286 = sbr.rel (%p284) target = $region32
      $region31: #{inception_forward.1} parent=11 // pred_region
        _
      $region32: #{inception_forward.1} parent=11 // pred_fallthru
        _
      // Predicated region
      $region33: #{inception_forward.1} parent=11 // pred_check
        %p287 = pneg %p168
      $region34: #{inception_forward.1} parent=11 // pred_check_branch
        %289 = sbr.rel (%p287) target = $region36
      $region35: #{inception_forward.1} parent=11 // pred_region
        _
      $region36: #{inception_forward.1} parent=11 // pred_fallthru
        _
      // Predicated region
      $region37: #{inception_forward.1} parent=11 // pred_check
        %p290 = pneg %p189
      $region38: #{inception_forward.1} parent=11 // pred_check_branch
        %292 = sbr.rel (%p290) target = $region40
      $region39: #{inception_forward.1} parent=11 // pred_region
        _
      $region40: #{inception_forward.1} parent=11 // pred_fallthru
        _
      // Predicated region
      $region41: #{inception_forward.1} parent=11 // pred_check
        %p293 = pneg %p210
      $region42: #{inception_forward.1} parent=11 // pred_check_branch
        %295 = sbr.rel (%p293) target = $region44
      $region43: #{inception_forward.1} parent=11 // pred_region
        _
      $region44: #{inception_forward.1} parent=11 // pred_fallthru
        _
      // Predicated region
      $region45: #{inception_forward.1} parent=11 // pred_check
        %p296 = pneg %p231
      $region46: #{inception_forward.1} parent=11 // pred_check_branch
        %298 = sbr.rel (%p296) target = $region48
      $region47: #{inception_forward.1} parent=11 // pred_region
        _
      $region48: #{inception_forward.1} parent=11 // pred_fallthru
        _
    $region12: #{inception_forward.1} parent=5 // pred_fallthru
      _
    %p299 = scmp.lt.s32.totalorder %s16, 2
    // Predicated region
    $region49: #{inception_forward.1} parent=5 // pred_check
      %p300 = pneg %p299
    $region50: #{inception_forward.1} parent=5 // pred_check_branch
      %302 = sbr.rel (%p300) target = $region52
    $region51: #{inception_forward.1} parent=5 // pred_region
      // Predicated region
      $region53: #{inception_forward.1} parent=51 // pred_check
        %p303 = pneg %p36
      $region54: #{inception_forward.1} parent=51 // pred_check_branch
        %305 = sbr.rel (%p303) target = $region56
      $region55: #{inception_forward.1} parent=51 // pred_region
        %p306 = scmp.lt.s32.totalorder %s16, 1
        %s307 = scalar_select %p306, %s16, 1
        %s308 = smul.addr %s307, 2
        %s309 = smul.addr %s308, 8
        %s310 = scalar_lea.vmem %s0, %s309
      $region56: #{inception_forward.1} parent=51 // pred_fallthru
        _
    $region52: #{inception_forward.1} parent=5 // pred_fallthru
      _
    %p311 = scmp.le.s32.totalorder 1, %s16
    %p312 = scmp.lt.s32.totalorder %s16, 3
    %p313 = pnand %p311, %p312
    %p314 = pneg %p313
    // Predicated region
    $region57: #{inception_forward.1} parent=5 // pred_check
      _
    $region58: #{inception_forward.1} parent=5 // pred_check_branch
      %316 = sbr.rel (%p313) target = $region60
    $region59: #{inception_forward.1} parent=5 // pred_region
      %s317 = ssub.s32 %s16, 1
      %p318 = scmp.lt.s32.totalorder %s21, 1
      %s319 = scalar_select %p318, %s21, 1
      %s320 = smul.addr %s319, 2
      %s321 = smul.addr %s320, 8
      %s322 = scalar_lea.vmem %s0, %s321
      %p323 = pneg %p42
      %p324 = pneg %p39
      %p325 = pneg %p63
      %p326 = pneg %p60
      %p327 = pneg %p84
      %p328 = pneg %p81
      %p329 = pneg %p105
      %p330 = pneg %p102
      %p331 = pneg %p126
      %p332 = pneg %p123
      %p333 = pneg %p147
      %p334 = pneg %p144
      %p335 = pneg %p168
      %p336 = pneg %p165
      %p337 = pneg %p189
      %p338 = pneg %p186
      %p339 = pneg %p210
      %p340 = pneg %p207
      %p341 = pneg %p231
      %p342 = pneg %p228
      %p343 = pneg %p257
      %p344 = pneg %p254
      %p345 = scmp.lt.s32.totalorder %s21, 1
      %s346 = scalar_select %p345, %s21, 1
      %s347 = smul.addr %s346, 10
      %s348 = smul.addr %s347, 8
      %s349 = scalar_lea.vmem %s10, %s348
      %p350 = scmp.lt.s32.totalorder %s21, 1
      %s351 = scalar_select %p350, %s21, 1
      %s352 = smul.addr %s351, 2
      %s353 = smul.addr %s352, 8
      %s354 = scalar_lea.vmem %s0, %s353
      %p355 = scmp.lt.s32.totalorder %s21, 1
      %s356 = scalar_select %p355, %s21, 1
      %s357 = smul.addr %s356, 10
      %s358 = smul.addr %s357, 8
      %s359 = scalar_lea.vmem %s10, %s358
      %v360 = vld [vmem:[%s354] sm:$0xff]
      %v361 = vld [vmem:[%s354 + $0x8] sm:$0xff]
      %v362 = vlaneseq
      %v363 = vand.u32 %v362, 127
      %v364 = vadd.s32 %v363, 128
      %v365 = vand.u32 %v363, 15
      %v366 = vand.u32 %v364, 15
      %v367 = vld [vmem:[%s1] sm:$0xff]
      %v368 = vld [vmem:[%s1 + $0x8] sm:$0xff]
      %v369 = vld [vmem:[%s1 + $0x10] sm:$0xff]
      %vm370 = vcmask 64512
      %v372 = vsel %vm370, %v367, 0
      %v375 = vsel %vm370, %v368, 0
      %v378 = vsel %vm370, %v369, 0
      %380 = vmatprep.subr.mxu0 %v361
      %381 = vmatpush1.msra.mxu0 %v360
      %382 = vmatprep.subr.mxu0 0.0
      %383 = vmatpush1.msra.mxu0 0.0
      %384 = vmatprep.subr.mxu0 0.0
      %385 = vmatpush1.msra.mxu0 0.0
      %386 = vmatprep.subr.mxu0 0.0
      %387 = vmatpush1.msra.mxu0 0.0
      %388 = vmatprep.subr.mxu0 0.0
      %389 = vmatpush1.msra.mxu0 0.0
      %390 = vmatprep.subr.mxu0 0.0
      %391 = vmatpush1.msra.mxu0 0.0
      %392 = vmatprep.subr.mxu0 0.0
      %393 = vmatpush1.msra.mxu0 0.0
      %394 = vmatprep.subr.mxu0 0.0
      %395 = vmatpush1.msra.mxu0 0.0
      %396 = vmatprep.subr.mxu0 0.0
      %397 = vmatpush1.msra.mxu0 0.0
      %398 = vmatprep.subr.mxu0 0.0
      %399 = vmatpush1.msra.mxu0 0.0
      %400 = vmatprep.subr.mxu0 0.0
      %401 = vmatpush1.msra.mxu0 0.0
      %402 = vmatprep.subr.mxu0 0.0
      %403 = vmatpush1.msra.mxu0 0.0
      %404 = vmatprep.subr.mxu0 0.0
      %405 = vmatpush1.msra.mxu0 0.0
      %406 = vmatprep.subr.mxu0 0.0
      %407 = vmatpush1.msra.mxu0 0.0
      %408 = vmatprep.subr.mxu0 0.0
      %409 = vmatpush1.msra.mxu0 0.0
      %410 = vmatprep.subr.mxu0 0.0
      %411 = vmatpush1.msra.mxu0 0.0
      %412 = vmatprep.subr.mxu0 0.0
      %413 = vmatpush1.msra.mxu0 0.0
      %414 = vmatprep.subr.mxu0 0.0
      %415 = vmatpush1.msra.mxu0 0.0
      %416 = vmatprep.subr.mxu0 0.0
      %417 = vmatpush1.msra.mxu0 0.0
      %418 = vmatprep.subr.mxu0 0.0
      %419 = vmatpush1.msra.mxu0 0.0
      %420 = vmatprep.subr.mxu0 0.0
      %421 = vmatpush1.msra.mxu0 0.0
      %422 = vmatprep.subr.mxu0 0.0
      %423 = vmatpush1.msra.mxu0 0.0
      %424 = vmatprep.subr.mxu0 0.0
      %425 = vmatpush1.msra.mxu0 0.0
      %426 = vmatprep.subr.mxu0 0.0
      %427 = vmatpush1.msra.mxu0 0.0
      %428 = vmatprep.subr.mxu0 0.0
      %429 = vmatpush1.msra.mxu0 0.0
      %430 = vmatprep.subr.mxu0 0.0
      %431 = vmatpush1.msra.mxu0 0.0
      %432 = vmatprep.subr.mxu0 0.0
      %433 = vmatpush1.msra.mxu0 0.0
      %434 = vmatprep.subr.mxu0 0.0
      %435 = vmatpush1.msra.mxu0 0.0
      %436 = vmatprep.subr.mxu0 0.0
      %437 = vmatpush1.msra.mxu0 0.0
      %438 = vmatprep.subr.mxu0 0.0
      %439 = vmatpush1.msra.mxu0 0.0
      %440 = vmatprep.subr.mxu0 0.0
      %441 = vmatpush1.msra.mxu0 0.0
      %442 = vmatprep.subr.mxu0 0.0
      %443 = vmatpush1.msra.mxu0 0.0
      %444 = vmatprep.mubr.f32.mxu0 0.0
      %445 = vmatmul.mubr.f32.gmra.mrb[0].mxu0 %v372
      %v446 = vpop.f32.mrb[0].mxu0
      %v447 = vadd.f32 0.0, %v446
      %v448 = vpop.f32.mrb[0].mxu0
      %v449 = vadd.f32 0.0, %v448
      %450 = vmatprep.mubr.f32.mxu0 0.0
      %451 = vmatmul.mubr.f32.gmra.mrb[0].mxu0 %v375
      %v452 = vpop.f32.mrb[0].mxu0
      %v453 = vadd.f32 0.0, %v452
      %v454 = vpop.f32.mrb[0].mxu0
      %v455 = vadd.f32 0.0, %v454
      %456 = vmatprep.mubr.f32.mxu0 0.0
      %457 = vmatmul.mubr.f32.gmra.mrb[0].mxu0 %v378
      %v458 = vpop.f32.mrb[0].mxu0
      %v459 = vadd.f32 0.0, %v458
      %v460 = vpop.f32.mrb[0].mxu0
      %v461 = vadd.f32 0.0, %v460
      %462 = vdwg.mxu0
      %v463 = vld [vmem:[%s2] sm:$0xff]
      %v464 = vld [vmem:[%s2 + $0x8] sm:$0xff]
      %v465 = vld [vmem:[%s2 + $0x10] sm:$0xff]
      %467 = vset.pattern.permute.xlu0 0
      %468 = vperm.xlu0 %467, %v463
      %v469 = vpop.permute.xlu0 %468
      %472 = vset.pattern.permute.xlu0 0
      %473 = vperm.xlu0 %472, %v464
      %v474 = vpop.permute.xlu0 %473
      %477 = vset.pattern.permute.xlu0 0
      %478 = vperm.xlu0 %477, %v465
      %v479 = vpop.permute.xlu0 %478
      %v481 = vmul.f32 %v447, %v469
      %v482 = vmul.f32 %v449, %v469
      %v483 = vmul.f32 %v453, %v474
      %v484 = vmul.f32 %v455, %v474
      %v485 = vmul.f32 %v459, %v479
      %v486 = vmul.f32 %v461, %v479
      %v487 = vld [vmem:[%s3] sm:$0xff]
      %v488 = vld [vmem:[%s3 + $0x8] sm:$0xff]
      %v489 = vld [vmem:[%s3 + $0x10] sm:$0xff]
      %491 = vset.pattern.permute.xlu0 0
      %492 = vperm.xlu0 %491, %v487
      %v493 = vpop.permute.xlu0 %492
      %496 = vset.pattern.permute.xlu0 0
      %497 = vperm.xlu0 %496, %v488
      %v498 = vpop.permute.xlu0 %497
      %501 = vset.pattern.permute.xlu0 0
      %502 = vperm.xlu0 %501, %v489
      %v503 = vpop.permute.xlu0 %502
      %v505 = vadd.f32 %v481, %v493
      %v506 = vadd.f32 %v482, %v493
      %v507 = vadd.f32 %v483, %v498
      %v508 = vadd.f32 %v484, %v498
      %v509 = vadd.f32 %v485, %v503
      %v510 = vadd.f32 %v486, %v503
      %v511 = vmax.f32 %v505, 0.0
      %v512 = vmax.f32 %v506, 0.0
      %v513 = vmax.f32 %v507, 0.0
      %v514 = vmax.f32 %v508, 0.0
      %v515 = vmax.f32 %v509, 0.0
      %v516 = vmax.f32 %v510, 0.0
      %517 = vrot.lane.b32.xlu0 %v513, 17
      %v518 = vpop.permute.xlu0 %517
      %519 = vrot.lane.b32.xlu0 %v515, 17
      %v520 = vpop.permute.xlu0 %519
      %521 = vrot.lane.b32.xlu0 %v514, 17
      %v522 = vpop.permute.xlu0 %521
      %523 = vrot.lane.b32.xlu0 %v516, 17
      %v524 = vpop.permute.xlu0 %523
      %vm525 = vcmp.lt.s32.totalorder %v363, 17
      %v526 = vsel %vm525, %v518, %v522
      %v527 = vsel %vm525, %v520, %v524
      %v528 = vsel %vm525, %v522, %v518
      %v529 = vsel %vm525, %v524, %v520
      %v530 = vadd.s32 %v363, 4294967280
      %v531 = vadd.s32 %v364, 4294967280
      %vm532 = vcmp.ge.s32.totalorder %v530, 0
      %vm533 = vcmp.ge.s32.totalorder %v531, 0
      %vm534 = vcmp.lt.s32.totalorder %v530, 256
      %vm535 = vcmp.lt.s32.totalorder %v531, 256
      %vm536 = vmand %vm532, %vm534
      %vm537 = vmand %vm533, %vm535
      %v538 = vadd.s32 %v365, 4294967295
      %v539 = vadd.s32 %v366, 4294967295
      %vm540 = vcmp.ge.s32.totalorder %v538, 0
      %vm541 = vcmp.ge.s32.totalorder %v539, 0
      %vm542 = vmand %vm536, %vm540
      %vm543 = vmand %vm537, %vm541
      %vm544 = vcmp.lt.s32.totalorder %v538, 16
      %vm545 = vcmp.lt.s32.totalorder %v539, 16
      %vm546 = vmand %vm542, %vm544
      %vm547 = vmand %vm543, %vm545
      %v548 = vsel %vm546, 1, 0
      %v549 = vsel %vm547, 1, 0
      %vm550 = vcmp.eq.s32.totalorder %v548, 1
      %vm551 = vcmp.eq.s32.totalorder %v549, 1
      %v552 = vsel %vm550, %v528, 0.0
      %v553 = vsel %vm551, %v526, 0.0
      %v554 = vsel %vm550, %v529, 0.0
      %v555 = vsel %vm551, %v527, 0.0
      %556 = vst [vmem:[#allocation2] sm:$0xff] %v552
      %557 = vst [vmem:[#allocation2 + $0x8] sm:$0xff] %v553
      %558 = vst [vmem:[#allocation2 + $0x10] sm:$0xff] %v554
      %559 = vst [vmem:[#allocation2 + $0x18] sm:$0xff] %v555
      %560 = vrot.lane.b32.xlu0 %v513, 16
      %v561 = vpop.permute.xlu0 %560
      %562 = vrot.lane.b32.xlu0 %v515, 16
      %v563 = vpop.permute.xlu0 %562
      %564 = vrot.lane.b32.xlu0 %v514, 16
      %v565 = vpop.permute.xlu0 %564
      %566 = vrot.lane.b32.xlu0 %v516, 16
      %v567 = vpop.permute.xlu0 %566
      %vm568 = vcmp.lt.s32.totalorder %v363, 16
      %v569 = vsel %vm568, %v561, %v565
      %v570 = vsel %vm568, %v563, %v567
      %v571 = vsel %vm568, %v565, %v561
      %v572 = vsel %vm568, %v567, %v563
      %vm573 = vcmp.ge.s32.totalorder %v365, 0
      %vm574 = vcmp.ge.s32.totalorder %v366, 0
      %vm575 = vmand %vm536, %vm573
      %vm576 = vmand %vm537, %vm574
      %vm577 = vcmp.lt.s32.totalorder %v365, 16
      %vm578 = vcmp.lt.s32.totalorder %v366, 16
      %vm579 = vmand %vm575, %vm577
      %vm580 = vmand %vm576, %vm578
      %v581 = vsel %vm579, 1, 0
      %v582 = vsel %vm580, 1, 0
      %vm583 = vcmp.eq.s32.totalorder %v581, 1
      %vm584 = vcmp.eq.s32.totalorder %v582, 1
      %v585 = vsel %vm583, %v571, 0.0
      %v586 = vsel %vm584, %v569, 0.0
      %v587 = vsel %vm583, %v572, 0.0
      %v588 = vsel %vm584, %v570, 0.0
      %589 = vst [vmem:[#allocation2 + $0x20] sm:$0xff] %v585
      %590 = vst [vmem:[#allocation2 + $0x28] sm:$0xff] %v586
      %591 = vst [vmem:[#allocation2 + $0x30] sm:$0xff] %v587
      %592 = vst [vmem:[#allocation2 + $0x38] sm:$0xff] %v588
      %593 = vrot.lane.b32.xlu0 %v513, 15
      %v594 = vpop.permute.xlu0 %593
      %595 = vrot.lane.b32.xlu0 %v515, 15
      %v596 = vpop.permute.xlu0 %595
      %597 = vrot.lane.b32.xlu0 %v514, 15
      %v598 = vpop.permute.xlu0 %597
      %599 = vrot.lane.b32.xlu0 %v516, 15
      %v600 = vpop.permute.xlu0 %599
      %vm601 = vcmp.lt.s32.totalorder %v363, 15
      %v602 = vsel %vm601, %v594, %v598
      %v603 = vsel %vm601, %v596, %v600
      %v604 = vsel %vm601, %v598, %v594
      %v605 = vsel %vm601, %v600, %v596
      %v606 = vadd.s32 %v365, 1
      %v607 = vadd.s32 %v366, 1
      %vm608 = vcmp.ge.s32.totalorder %v606, 0
      %vm609 = vcmp.ge.s32.totalorder %v607, 0
      %vm610 = vmand %vm536, %vm608
      %vm611 = vmand %vm537, %vm609
      %vm612 = vcmp.lt.s32.totalorder %v606, 16
      %vm613 = vcmp.lt.s32.totalorder %v607, 16
      %vm614 = vmand %vm610, %vm612
      %vm615 = vmand %vm611, %vm613
      %v616 = vsel %vm614, 1, 0
      %v617 = vsel %vm615, 1, 0
      %vm618 = vcmp.eq.s32.totalorder %v616, 1
      %vm619 = vcmp.eq.s32.totalorder %v617, 1
      %v620 = vsel %vm618, %v604, 0.0
      %v621 = vsel %vm619, %v602, 0.0
      %v622 = vsel %vm618, %v605, 0.0
      %v623 = vsel %vm619, %v603, 0.0
      %624 = vst [vmem:[#allocation2 + $0x40] sm:$0xff] %v620
      %625 = vst [vmem:[#allocation2 + $0x48] sm:$0xff] %v621
      %626 = vst [vmem:[#allocation2 + $0x50] sm:$0xff] %v622
      %627 = vst [vmem:[#allocation2 + $0x58] sm:$0xff] %v623
      %628 = vrot.lane.b32.xlu0 %v513, 1
      %v629 = vpop.permute.xlu0 %628
      %630 = vrot.lane.b32.xlu0 %v515, 1
      %v631 = vpop.permute.xlu0 %630
      %632 = vrot.lane.b32.xlu0 %v514, 1
      %v633 = vpop.permute.xlu0 %632
      %634 = vrot.lane.b32.xlu0 %v516, 1
      %v635 = vpop.permute.xlu0 %634
      %vm636 = vcmp.lt.s32.totalorder %v363, 1
      %v637 = vsel %vm636, %v629, %v633
      %v638 = vsel %vm636, %v631, %v635
      %v639 = vsel %vm636, %v633, %v629
      %v640 = vsel %vm636, %v635, %v631
      %vm641 = vcmp.ge.s32.totalorder %v363, 0
      %vm642 = vcmp.ge.s32.totalorder %v364, 0
      %vm643 = vcmp.lt.s32.totalorder %v363, 256
      %vm644 = vcmp.lt.s32.totalorder %v364, 256
      %vm645 = vmand %vm641, %vm643
      %vm646 = vmand %vm642, %vm644
      %vm647 = vmand %vm645, %vm540
      %vm648 = vmand %vm646, %vm541
      %vm649 = vmand %vm647, %vm544
      %vm650 = vmand %vm648, %vm545
      %v651 = vsel %vm649, 1, 0
      %v652 = vsel %vm650, 1, 0
      %vm653 = vcmp.eq.s32.totalorder %v651, 1
      %vm654 = vcmp.eq.s32.totalorder %v652, 1
      %v655 = vsel %vm653, %v639, 0.0
      %v656 = vsel %vm654, %v637, 0.0
      %v657 = vsel %vm653, %v640, 0.0
      %v658 = vsel %vm654, %v638, 0.0
      %659 = vst [vmem:[#allocation2 + $0x60] sm:$0xff] %v655
      %660 = vst [vmem:[#allocation2 + $0x68] sm:$0xff] %v656
      %661 = vst [vmem:[#allocation2 + $0x70] sm:$0xff] %v657
      %662 = vst [vmem:[#allocation2 + $0x78] sm:$0xff] %v658
      %vm663 = vmand %vm645, %vm573
      %vm664 = vmand %vm646, %vm574
      %vm665 = vmand %vm663, %vm577
      %vm666 = vmand %vm664, %vm578
      %v667 = vsel %vm665, 1, 0
      %v668 = vsel %vm666, 1, 0
      %vm669 = vcmp.eq.s32.totalorder %v667, 1
      %vm670 = vcmp.eq.s32.totalorder %v668, 1
      %v671 = vsel %vm669, %v513, 0.0
      %v672 = vsel %vm670, %v514, 0.0
      %v673 = vsel %vm669, %v515, 0.0
      %v674 = vsel %vm670, %v516, 0.0
      %675 = vst [vmem:[#allocation2 + $0x80] sm:$0xff] %v671
      %676 = vst [vmem:[#allocation2 + $0x88] sm:$0xff] %v672
      %677 = vst [vmem:[#allocation2 + $0x90] sm:$0xff] %v673
      %678 = vst [vmem:[#allocation2 + $0x98] sm:$0xff] %v674
      %679 = vrot.lane.b32.xlu0 %v513, 127
      %v680 = vpop.permute.xlu0 %679
      %681 = vrot.lane.b32.xlu0 %v515, 127
      %v682 = vpop.permute.xlu0 %681
      %683 = vrot.lane.b32.xlu0 %v514, 127
      %v684 = vpop.permute.xlu0 %683
      %685 = vrot.lane.b32.xlu0 %v516, 127
      %v686 = vpop.permute.xlu0 %685
      %vm687 = vcmp.lt.s32.totalorder %v363, 127
      %v688 = vsel %vm687, %v680, %v684
      %v689 = vsel %vm687, %v682, %v686
      %v690 = vsel %vm687, %v684, %v680
      %v691 = vsel %vm687, %v686, %v682
      %vm692 = vmand %vm645, %vm608
      %vm693 = vmand %vm646, %vm609
      %vm694 = vmand %vm692, %vm612
      %vm695 = vmand %vm693, %vm613
      %v696 = vsel %vm694, 1, 0
      %v697 = vsel %vm695, 1, 0
      %vm698 = vcmp.eq.s32.totalorder %v696, 1
      %vm699 = vcmp.eq.s32.totalorder %v697, 1
      %v700 = vsel %vm698, %v688, 0.0
      %v701 = vsel %vm699, %v690, 0.0
      %v702 = vsel %vm698, %v689, 0.0
      %v703 = vsel %vm699, %v691, 0.0
      %704 = vst [vmem:[#allocation2 + $0xa0] sm:$0xff] %v700
      %705 = vst [vmem:[#allocation2 + $0xa8] sm:$0xff] %v701
      %706 = vst [vmem:[#allocation2 + $0xb0] sm:$0xff] %v702
      %707 = vst [vmem:[#allocation2 + $0xb8] sm:$0xff] %v703
      %708 = vrot.lane.b32.xlu0 %v513, 113
      %v709 = vpop.permute.xlu0 %708
      %710 = vrot.lane.b32.xlu0 %v515, 113
      %v711 = vpop.permute.xlu0 %710
      %712 = vrot.lane.b32.xlu0 %v514, 113
      %v713 = vpop.permute.xlu0 %712
      %714 = vrot.lane.b32.xlu0 %v516, 113
      %v715 = vpop.permute.xlu0 %714
      %vm716 = vcmp.lt.s32.totalorder %v363, 113
      %v717 = vsel %vm716, %v709, %v713
      %v718 = vsel %vm716, %v711, %v715
      %v719 = vsel %vm716, %v713, %v709
      %v720 = vsel %vm716, %v715, %v711
      %v721 = vadd.s32 %v363, 16
      %v722 = vadd.s32 %v364, 16
      %vm723 = vcmp.ge.s32.totalorder %v721, 0
      %vm724 = vcmp.ge.s32.totalorder %v722, 0
      %vm725 = vcmp.lt.s32.totalorder %v721, 256
      %vm726 = vcmp.lt.s32.totalorder %v722, 256
      %vm727 = vmand %vm723, %vm725
      %vm728 = vmand %vm724, %vm726
      %vm729 = vmand %vm727, %vm540
      %vm730 = vmand %vm728, %vm541
      %vm731 = vmand %vm729, %vm544
      %vm732 = vmand %vm730, %vm545
      %v733 = vsel %vm731, 1, 0
      %v734 = vsel %vm732, 1, 0
      %vm735 = vcmp.eq.s32.totalorder %v733, 1
      %vm736 = vcmp.eq.s32.totalorder %v734, 1
      %v737 = vsel %vm735, %v717, 0.0
      %v738 = vsel %vm736, %v719, 0.0
      %v739 = vsel %vm735, %v718, 0.0
      %v740 = vsel %vm736, %v720, 0.0
      %741 = vst [vmem:[#allocation2 + $0xc0] sm:$0xff] %v737
      %742 = vst [vmem:[#allocation2 + $0xc8] sm:$0xff] %v738
      %743 = vst [vmem:[#allocation2 + $0xd0] sm:$0xff] %v739
      %744 = vst [vmem:[#allocation2 + $0xd8] sm:$0xff] %v740
      %745 = vrot.lane.b32.xlu0 %v513, 112
      %v746 = vpop.permute.xlu0 %745
      %747 = vrot.lane.b32.xlu0 %v515, 112
      %v748 = vpop.permute.xlu0 %747
      %749 = vrot.lane.b32.xlu0 %v514, 112
      %v750 = vpop.permute.xlu0 %749
      %751 = vrot.lane.b32.xlu0 %v516, 112
      %v752 = vpop.permute.xlu0 %751
      %vm753 = vcmp.lt.s32.totalorder %v363, 112
      %v754 = vsel %vm753, %v746, %v750
      %v755 = vsel %vm753, %v748, %v752
      %v756 = vsel %vm753, %v750, %v746
      %v757 = vsel %vm753, %v752, %v748
      %vm758 = vmand %vm727, %vm573
      %vm759 = vmand %vm728, %vm574
      %vm760 = vmand %vm758, %vm577
      %vm761 = vmand %vm759, %vm578
      %v762 = vsel %vm760, 1, 0
      %v763 = vsel %vm761, 1, 0
      %vm764 = vcmp.eq.s32.totalorder %v762, 1
      %vm765 = vcmp.eq.s32.totalorder %v763, 1
      %v766 = vsel %vm764, %v754, 0.0
      %v767 = vsel %vm765, %v756, 0.0
      %v768 = vsel %vm764, %v755, 0.0
      %v769 = vsel %vm765, %v757, 0.0
      %770 = vst [vmem:[#allocation2 + $0xe0] sm:$0xff] %v766
      %771 = vst [vmem:[#allocation2 + $0xe8] sm:$0xff] %v767
      %772 = vst [vmem:[#allocation2 + $0xf0] sm:$0xff] %v768
      %773 = vst [vmem:[#allocation2 + $0xf8] sm:$0xff] %v769
      %774 = vrot.lane.b32.xlu0 %v513, 111
      %v775 = vpop.permute.xlu0 %774
      %776 = vrot.lane.b32.xlu0 %v515, 111
      %v777 = vpop.permute.xlu0 %776
      %778 = vrot.lane.b32.xlu0 %v514, 111
      %v779 = vpop.permute.xlu0 %778
      %780 = vrot.lane.b32.xlu0 %v516, 111
      %v781 = vpop.permute.xlu0 %780
      %vm782 = vcmp.lt.s32.totalorder %v363, 111
      %v783 = vsel %vm782, %v775, %v779
      %v784 = vsel %vm782, %v777, %v781
      %v785 = vsel %vm782, %v779, %v775
      %v786 = vsel %vm782, %v781, %v777
      %vm787 = vmand %vm727, %vm608
      %vm788 = vmand %vm728, %vm609
      %vm789 = vmand %vm787, %vm612
      %vm790 = vmand %vm788, %vm613
      %v791 = vsel %vm789, 1, 0
      %v792 = vsel %vm790, 1, 0
      %vm793 = vcmp.eq.s32.totalorder %v791, 1
      %vm794 = vcmp.eq.s32.totalorder %v792, 1
      %v795 = vsel %vm793, %v783, 0.0
      %v796 = vsel %vm794, %v785, 0.0
      %v797 = vsel %vm793, %v784, 0.0
      %v798 = vsel %vm794, %v786, 0.0
      %799 = vst [vmem:[#allocation2 + $0x100] sm:$0xff] %v795
      %800 = vst [vmem:[#allocation2 + $0x108] sm:$0xff] %v796
      %801 = vst [vmem:[#allocation2 + $0x110] sm:$0xff] %v797
      %802 = vst [vmem:[#allocation2 + $0x118] sm:$0xff] %v798
      %v803 = vld [vmem:[%s4] sm:$0xff]
      %v804 = vld [vmem:[%s4 + $0x8] sm:$0xff]
      %v805 = vld [vmem:[%s4 + $0x10] sm:$0xff]
      %v806 = vld [vmem:[%s4 + $0x18] sm:$0xff]
      %v807 = vld [vmem:[%s4 + $0x20] sm:$0xff]
      %v808 = vld [vmem:[%s4 + $0x28] sm:$0xff]
      %v809 = vld [vmem:[#allocation2] sm:$0xff]
      %v810 = vld [vmem:[#allocation2 + $0x8] sm:$0xff]
      %v811 = vld [vmem:[#allocation2 + $0x10] sm:$0xff]
      %v812 = vld [vmem:[#allocation2 + $0x18] sm:$0xff]
      %v813 = vld [vmem:[#allocation2 + $0x20] sm:$0xff]
      %v814 = vld [vmem:[#allocation2 + $0x28] sm:$0xff]
      %v815 = vld [vmem:[#allocation2 + $0x30] sm:$0xff]
      %v816 = vld [vmem:[#allocation2 + $0x38] sm:$0xff]
      %v817 = vld [vmem:[#allocation2 + $0x40] sm:$0xff]
      %v818 = vld [vmem:[#allocation2 + $0x48] sm:$0xff]
      %v819 = vld [vmem:[#allocation2 + $0x50] sm:$0xff]
      %v820 = vld [vmem:[#allocation2 + $0x58] sm:$0xff]
      %v821 = vld [vmem:[#allocation2 + $0x60] sm:$0xff]
      %v822 = vld [vmem:[#allocation2 + $0x68] sm:$0xff]
      %v823 = vld [vmem:[#allocation2 + $0x70] sm:$0xff]
      %v824 = vld [vmem:[#allocation2 + $0x78] sm:$0xff]
      %v825 = vld [vmem:[#allocation2 + $0x80] sm:$0xff]
      %v826 = vld [vmem:[#allocation2 + $0x88] sm:$0xff]
      %v827 = vld [vmem:[#allocation2 + $0x90] sm:$0xff]
      %v828 = vld [vmem:[#allocation2 + $0x98] sm:$0xff]
      %v829 = vld [vmem:[#allocation2 + $0xa0] sm:$0xff]
      %v830 = vld [vmem:[#allocation2 + $0xa8] sm:$0xff]
      %v831 = vld [vmem:[#allocation2 + $0xb0] sm:$0xff]
      %v832 = vld [vmem:[#allocation2 + $0xb8] sm:$0xff]
      %v833 = vld [vmem:[#allocation2 + $0xc0] sm:$0xff]
      %v834 = vld [vmem:[#allocation2 + $0xc8] sm:$0xff]
      %v835 = vld [vmem:[#allocation2 + $0xd0] sm:$0xff]
      %v836 = vld [vmem:[#allocation2 + $0xd8] sm:$0xff]
      %v837 = vld [vmem:[#allocation2 + $0xe0] sm:$0xff]
      %v838 = vld [vmem:[#allocation2 + $0xe8] sm:$0xff]
      %v839 = vld [vmem:[#allocation2 + $0xf0] sm:$0xff]
      %v840 = vld [vmem:[#allocation2 + $0xf8] sm:$0xff]
      %v841 = vld [vmem:[#allocation2 + $0x100] sm:$0xff]
      %v842 = vld [vmem:[#allocation2 + $0x108] sm:$0xff]
      %v843 = vld [vmem:[#allocation2 + $0x110] sm:$0xff]
      %v844 = vld [vmem:[#allocation2 + $0x118] sm:$0xff]
      %vm845 = vcmask 130048
      %v847 = vsel %vm845, %v804, 0
      %v850 = vsel %vm845, %v806, 0
      %v853 = vsel %vm845, %v808, 0
      %855 = vmatprep.subr.mxu0 %v810
      %856 = vmatpush1.msra.mxu0 %v809
      %857 = vmatprep.subr.mxu0 %v812
      %858 = vmatpush1.msra.mxu0 %v811
      %859 = vmatprep.subr.mxu0 %v814
      %860 = vmatpush1.msra.mxu0 %v813
      %861 = vmatprep.subr.mxu0 %v816
      %862 = vmatpush1.msra.mxu0 %v815
      %863 = vmatprep.subr.mxu0 %v818
      %864 = vmatpush1.msra.mxu0 %v817
      %865 = vmatprep.subr.mxu0 %v820
      %866 = vmatpush1.msra.mxu0 %v819
      %867 = vmatprep.subr.mxu0 %v822
      %868 = vmatpush1.msra.mxu0 %v821
      %869 = vmatprep.subr.mxu0 %v824
      %870 = vmatpush1.msra.mxu0 %v823
      %871 = vmatprep.subr.mxu0 %v826
      %872 = vmatpush1.msra.mxu0 %v825
      %873 = vmatprep.subr.mxu0 %v828
      %874 = vmatpush1.msra.mxu0 %v827
      %875 = vmatprep.subr.mxu0 %v830
      %876 = vmatpush1.msra.mxu0 %v829
      %877 = vmatprep.subr.mxu0 %v832
      %878 = vmatpush1.msra.mxu0 %v831
      %879 = vmatprep.subr.mxu0 %v834
      %880 = vmatpush1.msra.mxu0 %v833
      %881 = vmatprep.subr.mxu0 %v836
      %882 = vmatpush1.msra.mxu0 %v835
      %883 = vmatprep.subr.mxu0 %v838
      %884 = vmatpush1.msra.mxu0 %v837
      %885 = vmatprep.subr.mxu0 %v840
      %886 = vmatpush1.msra.mxu0 %v839
      %887 = vmatprep.subr.mxu0 %v842
      %888 = vmatpush1.msra.mxu0 %v841
      %889 = vmatprep.subr.mxu0 %v844
      %890 = vmatpush1.msra.mxu0 %v843
      %891 = vmatprep.subr.mxu0 0.0
      %892 = vmatpush1.msra.mxu0 0.0
      %893 = vmatprep.subr.mxu0 0.0
      %894 = vmatpush1.msra.mxu0 0.0
      %895 = vmatprep.subr.mxu0 0.0
      %896 = vmatpush1.msra.mxu0 0.0
      %897 = vmatprep.subr.mxu0 0.0
      %898 = vmatpush1.msra.mxu0 0.0
      %899 = vmatprep.subr.mxu0 0.0
      %900 = vmatpush1.msra.mxu0 0.0
      %901 = vmatprep.subr.mxu0 0.0
      %902 = vmatpush1.msra.mxu0 0.0
      %903 = vmatprep.subr.mxu0 0.0
      %904 = vmatpush1.msra.mxu0 0.0
      %905 = vmatprep.subr.mxu0 0.0
      %906 = vmatpush1.msra.mxu0 0.0
      %907 = vmatprep.subr.mxu0 0.0
      %908 = vmatpush1.msra.mxu0 0.0
      %909 = vmatprep.subr.mxu0 0.0
      %910 = vmatpush1.msra.mxu0 0.0
      %911 = vmatprep.subr.mxu0 0.0
      %912 = vmatpush1.msra.mxu0 0.0
      %913 = vmatprep.subr.mxu0 0.0
      %914 = vmatpush1.msra.mxu0 0.0
      %915 = vmatprep.subr.mxu0 0.0
      %916 = vmatpush1.msra.mxu0 0.0
      %917 = vmatprep.subr.mxu0 0.0
      %918 = vmatpush1.msra.mxu0 0.0
      %919 = vmatprep.mubr.f32.mxu0 %v847
      %920 = vmatmul.mubr.f32.gmra.mrb[0].mxu0 %v803
      %v921 = vpop.f32.mrb[0].mxu0
      %v922 = vadd.f32 0.0, %v921
      %v923 = vpop.f32.mrb[0].mxu0
      %v924 = vadd.f32 0.0, %v923
      %925 = vmatprep.mubr.f32.mxu0 %v850
      %926 = vmatmul.mubr.f32.gmra.mrb[0].mxu0 %v805
      %v927 = vpop.f32.mrb[0].mxu0
      %v928 = vadd.f32 0.0, %v927
      %v929 = vpop.f32.mrb[0].mxu0
      %v930 = vadd.f32 0.0, %v929
      %931 = vmatprep.mubr.f32.mxu0 %v853
      %932 = vmatmul.mubr.f32.gmra.mrb[0].mxu0 %v807
      %v933 = vpop.f32.mrb[0].mxu0
      %v934 = vadd.f32 0.0, %v933
      %v935 = vpop.f32.mrb[0].mxu0
      %v936 = vadd.f32 0.0, %v935
      %937 = vdwg.mxu0
      %v938 = vld [vmem:[%s5] sm:$0xff]
      %v939 = vld [vmem:[%s5 + $0x8] sm:$0xff]
      %v940 = vld [vmem:[%s5 + $0x10] sm:$0xff]
      %942 = vset.pattern.permute.xlu0 0
      %943 = vperm.xlu0 %942, %v938
      %v944 = vpop.permute.xlu0 %943
      %947 = vset.pattern.permute.xlu0 0
      %948 = vperm.xlu0 %947, %v939
      %v949 = vpop.permute.xlu0 %948
      %952 = vset.pattern.permute.xlu0 0
      %953 = vperm.xlu0 %952, %v940
      %v954 = vpop.permute.xlu0 %953
      %v956 = vmul.f32 %v922, %v944
      %v957 = vmul.f32 %v924, %v944
      %v958 = vmul.f32 %v928, %v949
      %v959 = vmul.f32 %v930, %v949
      %v960 = vmul.f32 %v934, %v954
      %v961 = vmul.f32 %v936, %v954
      %v962 = vld [vmem:[%s6] sm:$0xff]
      %v963 = vld [vmem:[%s6 + $0x8] sm:$0xff]
      %v964 = vld [vmem:[%s6 + $0x10] sm:$0xff]
      %966 = vset.pattern.permute.xlu0 0
      %967 = vperm.xlu0 %966, %v962
      %v968 = vpop.permute.xlu0 %967
      %971 = vset.pattern.permute.xlu0 0
      %972 = vperm.xlu0 %971, %v963
      %v973 = vpop.permute.xlu0 %972
      %976 = vset.pattern.permute.xlu0 0
      %977 = vperm.xlu0 %976, %v964
      %v978 = vpop.permute.xlu0 %977
      %v980 = vadd.f32 %v956, %v968
      %v981 = vadd.f32 %v957, %v968
      %v982 = vadd.f32 %v958, %v973
      %v983 = vadd.f32 %v959, %v973
      %v984 = vadd.f32 %v960, %v978
      %v985 = vadd.f32 %v961, %v978
      %v986 = vmax.f32 %v980, 0.0
      %v987 = vmax.f32 %v981, 0.0
      %v988 = vmax.f32 %v982, 0.0
      %v989 = vmax.f32 %v983, 0.0
      %v990 = vmax.f32 %v984, 0.0
      %v991 = vmax.f32 %v985, 0.0
      %992 = vrot.lane.b32.xlu0 %v360, 17
      %v993 = vpop.permute.xlu0 %992
      %994 = vrot.lane.b32.xlu0 %v361, 17
      %v995 = vpop.permute.xlu0 %994
      %v996 = vsel %vm525, %v993, %v995
      %v997 = vsel %vm525, %v995, %v993
      %v998 = vsel %vm550, %v997, -inf
      %v999 = vsel %vm551, %v996, -inf
      %v1000 = vmax.f32 %v360, %v998
      %v1001 = vmax.f32 %v361, %v999
      %1002 = vrot.lane.b32.xlu0 %v360, 16
      %v1003 = vpop.permute.xlu0 %1002
      %1004 = vrot.lane.b32.xlu0 %v361, 16
      %v1005 = vpop.permute.xlu0 %1004
      %v1006 = vsel %vm568, %v1003, %v1005
      %v1007 = vsel %vm568, %v1005, %v1003
      %v1008 = vsel %vm583, %v1007, -inf
      %v1009 = vsel %vm584, %v1006, -inf
      %v1010 = vmax.f32 %v1000, %v1008
      %v1011 = vmax.f32 %v1001, %v1009
      %1012 = vrot.lane.b32.xlu0 %v360, 15
      %v1013 = vpop.permute.xlu0 %1012
      %1014 = vrot.lane.b32.xlu0 %v361, 15
      %v1015 = vpop.permute.xlu0 %1014
      %v1016 = vsel %vm601, %v1013, %v1015
      %v1017 = vsel %vm601, %v1015, %v1013
      %v1018 = vsel %vm618, %v1017, -inf
      %v1019 = vsel %vm619, %v1016, -inf
      %v1020 = vmax.f32 %v1010, %v1018
      %v1021 = vmax.f32 %v1011, %v1019
      %1022 = vrot.lane.b32.xlu0 %v360, 1
      %v1023 = vpop.permute.xlu0 %1022
      %1024 = vrot.lane.b32.xlu0 %v361, 1
      %v1025 = vpop.permute.xlu0 %1024
      %v1026 = vsel %vm636, %v1023, %v1025
      %v1027 = vsel %vm636, %v1025, %v1023
      %v1028 = vsel %vm653, %v1027, -inf
      %v1029 = vsel %vm654, %v1026, -inf
      %v1030 = vmax.f32 %v1020, %v1028
      %v1031 = vmax.f32 %v1021, %v1029
      %1032 = vrot.lane.b32.xlu0 %v360, 127
      %v1033 = vpop.permute.xlu0 %1032
      %1034 = vrot.lane.b32.xlu0 %v361, 127
      %v1035 = vpop.permute.xlu0 %1034
      %v1036 = vsel %vm687, %v1033, %v1035
      %v1037 = vsel %vm687, %v1035, %v1033
      %v1038 = vsel %vm698, %v1036, -inf
      %v1039 = vsel %vm699, %v1037, -inf
      %v1040 = vmax.f32 %v1030, %v1038
      %v1041 = vmax.f32 %v1031, %v1039
      %1042 = vrot.lane.b32.xlu0 %v360, 113
      %v1043 = vpop.permute.xlu0 %1042
      %1044 = vrot.lane.b32.xlu0 %v361, 113
      %v1045 = vpop.permute.xlu0 %1044
      %v1046 = vsel %vm716, %v1043, %v1045
      %v1047 = vsel %vm716, %v1045, %v1043
      %v1048 = vsel %vm735, %v1046, -inf
      %v1049 = vsel %vm736, %v1047, -inf
      %v1050 = vmax.f32 %v1040, %v1048
      %v1051 = vmax.f32 %v1041, %v1049
      %1052 = vrot.lane.b32.xlu0 %v360, 112
      %v1053 = vpop.permute.xlu0 %1052
      %1054 = vrot.lane.b32.xlu0 %v361, 112
      %v1055 = vpop.permute.xlu0 %1054
      %v1056 = vsel %vm753, %v1053, %v1055
      %v1057 = vsel %vm753, %v1055, %v1053
      %v1058 = vsel %vm764, %v1056, -inf
      %v1059 = vsel %vm765, %v1057, -inf
      %v1060 = vmax.f32 %v1050, %v1058
      %v1061 = vmax.f32 %v1051, %v1059
      %1062 = vrot.lane.b32.xlu0 %v360, 111
      %v1063 = vpop.permute.xlu0 %1062
      %1064 = vrot.lane.b32.xlu0 %v361, 111
      %v1065 = vpop.permute.xlu0 %1064
      %v1066 = vsel %vm782, %v1063, %v1065
      %v1067 = vsel %vm782, %v1065, %v1063
      %v1068 = vsel %vm793, %v1066, -inf
      %v1069 = vsel %vm794, %v1067, -inf
      %v1070 = vmax.f32 %v1060, %v1068
      %v1071 = vmax.f32 %v1061, %v1069
      %v1072 = vld [vmem:[%s7] sm:$0xff]
      %v1074 = vsel %vm370, %v1072, 0
      %1076 = vmatprep.subr.mxu0 %v1071
      %1077 = vmatpush1.msra.mxu0 %v1070
      %1078 = vmatprep.subr.mxu0 0.0
      %1079 = vmatpush1.msra.mxu0 0.0
      %1080 = vmatprep.subr.mxu0 0.0
      %1081 = vmatpush1.msra.mxu0 0.0
      %1082 = vmatprep.subr.mxu0 0.0
      %1083 = vmatpush1.msra.mxu0 0.0
      %1084 = vmatprep.subr.mxu0 0.0
      %1085 = vmatpush1.msra.mxu0 0.0
      %1086 = vmatprep.subr.mxu0 0.0
      %1087 = vmatpush1.msra.mxu0 0.0
      %1088 = vmatprep.subr.mxu0 0.0
      %1089 = vmatpush1.msra.mxu0 0.0
      %1090 = vmatprep.subr.mxu0 0.0
      %1091 = vmatpush1.msra.mxu0 0.0
      %1092 = vmatprep.subr.mxu0 0.0
      %1093 = vmatpush1.msra.mxu0 0.0
      %1094 = vmatprep.subr.mxu0 0.0
      %1095 = vmatpush1.msra.mxu0 0.0
      %1096 = vmatprep.subr.mxu0 0.0
      %1097 = vmatpush1.msra.mxu0 0.0
      %1098 = vmatprep.subr.mxu0 0.0
      %1099 = vmatpush1.msra.mxu0 0.0
      %1100 = vmatprep.subr.mxu0 0.0
      %1101 = vmatpush1.msra.mxu0 0.0
      %1102 = vmatprep.subr.mxu0 0.0
      %1103 = vmatpush1.msra.mxu0 0.0
      %1104 = vmatprep.subr.mxu0 0.0
      %1105 = vmatpush1.msra.mxu0 0.0
      %1106 = vmatprep.subr.mxu0 0.0
      %1107 = vmatpush1.msra.mxu0 0.0
      %1108 = vmatprep.subr.mxu0 0.0
      %1109 = vmatpush1.msra.mxu0 0.0
      %1110 = vmatprep.subr.mxu0 0.0
      %1111 = vmatpush1.msra.mxu0 0.0
      %1112 = vmatprep.subr.mxu0 0.0
      %1113 = vmatpush1.msra.mxu0 0.0
      %1114 = vmatprep.subr.mxu0 0.0
      %1115 = vmatpush1.msra.mxu0 0.0
      %1116 = vmatprep.subr.mxu0 0.0
      %1117 = vmatpush1.msra.mxu0 0.0
      %1118 = vmatprep.subr.mxu0 0.0
      %1119 = vmatpush1.msra.mxu0 0.0
      %1120 = vmatprep.subr.mxu0 0.0
      %1121 = vmatpush1.msra.mxu0 0.0
      %1122 = vmatprep.subr.mxu0 0.0
      %1123 = vmatpush1.msra.mxu0 0.0
      %1124 = vmatprep.subr.mxu0 0.0
      %1125 = vmatpush1.msra.mxu0 0.0
      %1126 = vmatprep.subr.mxu0 0.0
      %1127 = vmatpush1.msra.mxu0 0.0
      %1128 = vmatprep.subr.mxu0 0.0
      %1129 = vmatpush1.msra.mxu0 0.0
      %1130 = vmatprep.subr.mxu0 0.0
      %1131 = vmatpush1.msra.mxu0 0.0
      %1132 = vmatprep.subr.mxu0 0.0
      %1133 = vmatpush1.msra.mxu0 0.0
      %1134 = vmatprep.subr.mxu0 0.0
      %1135 = vmatpush1.msra.mxu0 0.0
      %1136 = vmatprep.subr.mxu0 0.0
      %1137 = vmatpush1.msra.mxu0 0.0
      %1138 = vmatprep.subr.mxu0 0.0
      %1139 = vmatpush1.msra.mxu0 0.0
      %1140 = vmatprep.mubr.f32.mxu0 0.0
      %1141 = vmatmul.mubr.f32.gmra.mrb[0].mxu0 %v1074
      %v1142 = vpop.f32.mrb[0].mxu0
      %v1143 = vadd.f32 0.0, %v1142
      %v1144 = vpop.f32.mrb[0].mxu0
      %v1145 = vadd.f32 0.0, %v1144
      %1146 = vdwg.mxu0
      %v1147 = vld [vmem:[%s8] sm:$0xff]
      %1149 = vset.pattern.permute.xlu0 0
      %1150 = vperm.xlu0 %1149, %v1147
      %v1151 = vpop.permute.xlu0 %1150
      %v1153 = vmul.f32 %v1143, %v1151
      %v1154 = vmul.f32 %v1145, %v1151
      %v1155 = vld [vmem:[%s9] sm:$0xff]
      %1157 = vset.pattern.permute.xlu0 0
      %1158 = vperm.xlu0 %1157, %v1155
      %v1159 = vpop.permute.xlu0 %1158
      %v1161 = vadd.f32 %v1153, %v1159
      %v1162 = vadd.f32 %v1154, %v1159
      %v1163 = vmax.f32 %v1161, 0.0
      %v1164 = vmax.f32 %v1162, 0.0
      %1165 = vst [vmem:[%s359] sm:$0xff] %v511
      %1166 = vst [vmem:[%s359 + $0x8] sm:$0xff] %v512
      %1167 = vst [vmem:[%s359 + $0x10] sm:$0xff] %v986
      %1168 = vst [vmem:[%s359 + $0x18] sm:$0xff] %v987
      %1169 = vst [vmem:[%s359 + $0x20] sm:$0xff] %v988
      %1170 = vst [vmem:[%s359 + $0x28] sm:$0xff] %v989
      %1171 = vst [vmem:[%s359 + $0x30] sm:$0xff] %v990
      %1172 = vst [vmem:[%s359 + $0x38] sm:$0xff] %v991
      %1173 = vst [vmem:[%s359 + $0x40] sm:$0xff] %v1163
      %1174 = vst [vmem:[%s359 + $0x48] sm:$0xff] %v1164
      %p1175 = scmp.lt.s32.totalorder %s21, 1
      %s1176 = scalar_select %p1175, %s21, 1
      %s1177 = smul.addr %s1176, 10
      %s1178 = smul.addr %s1177, 8
      %s1179 = scalar_lea.vmem %s10, %s1178
      // Predicated region
      $region61: #{inception_forward.1} parent=59 // pred_check
        %p1180 = pneg %p254
      $region62: #{inception_forward.1} parent=59 // pred_check_branch
        %1182 = sbr.rel (%p1180) target = $region64
      $region63: #{inception_forward.1} parent=59 // pred_region
        _
      $region64: #{inception_forward.1} parent=59 // pred_fallthru
        _
    $region60: #{inception_forward.1} parent=5 // pred_fallthru
      _
    %p1183 = scmp.le.s32.totalorder 2, %s16
    // Predicated region
    $region65: #{inception_forward.1} parent=5 // pred_check
      %p1184 = pneg %p1183
    $region66: #{inception_forward.1} parent=5 // pred_check_branch
      %1186 = sbr.rel (%p1184) target = $region68
    $region67: #{inception_forward.1} parent=5 // pred_region
      %s1187 = ssub.s32 %s16, 2
      // Predicated region
      $region69: #{inception_forward.1} parent=67 // pred_check
        %p1188 = pneg %p260
      $region70: #{inception_forward.1} parent=67 // pred_check_branch
        %1190 = sbr.rel (%p1188) target = $region72
      $region71: #{inception_forward.1} parent=67 // pred_region
        %p1191 = scmp.lt.s32.totalorder %s22, 1
        %s1192 = scalar_select %p1191, %s22, 1
        %s1193 = smul.addr %s1192, 10
        %s1194 = smul.addr %s1193, 8
        %s1195 = scalar_lea.vmem %s10, %s1194
      $region72: #{inception_forward.1} parent=67 // pred_fallthru
        _
    $region68: #{inception_forward.1} parent=5 // pred_fallthru
      _
  $region6: #{inception_forward.1} parent=0 // loop_footer
    %s20 = sadd.s32 1, %s16
  $region7: #{inception_forward.1} parent=0 // loop_footer_branch
    %15 = sbr.rel target = $region3
  $region8: #{inception_forward.1} parent=0 // loop_exit
    _

</llo_original>
